<compile_context>
chip_gen: v6e
topology: v6e:2x2x1
jax: 0.10.0
libtpu: 0.0.40
codegen_flags: <defaults>
</compile_context>

<pallas_src>
import functools

import numpy as np
import jax
import jax.numpy as jnp
from jax.experimental import pallas as pl
from jax.experimental.pallas import tpu as pltpu

TIME_EMB_DIM = 32
HALF_DIM = TIME_EMB_DIM // 2
BOLTZ = 1.380649e-23
T_CONST = 300.0
LEAKY_SLOPE = 0.01          # nn.LeakyReLU default
BN_EPS = 1e-5               # nn.BatchNorm1d default


def _leaky_relu(x):
    return jnp.where(x >= 0, x, LEAKY_SLOPE * x)


def boltzmann_kernel(dt_ref, d0_ref, v0_ref,
                     smallw_ref, bias3_ref,
                     w1d_ref, wdf_ref, bdf_ref,
                     d1_ref, v1_ref, *, hw):
    B = d0_ref.shape[0]

    # ---- dt: B scalars from SMEM -> (B, 32) broadcast (no VMEM DMA for dt) ----
    row = jax.lax.broadcasted_iota(jnp.int32, (B, TIME_EMB_DIM), 0)
    t = jnp.zeros((B, TIME_EMB_DIM), jnp.float32)
    for b in range(B):                       # B is tiny and static
        t = jnp.where(row == b, dt_ref[b], t)

    # ---- SinusoidalPositionEmbeddings (freqs rebuilt in-kernel, sin|cos fused
    #      into one lane-selected (B,32) operand -> single 32x32 matmul) ----
    lane = jax.lax.broadcasted_iota(jnp.int32, (B, TIME_EMB_DIM), 1)
    half_mask = lane < HALF_DIM
    pos = jnp.where(half_mask, lane, lane - HALF_DIM).astype(jnp.float32)
    freqs = jnp.exp(pos * (-np.log(10000.0) / (HALF_DIM - 1)))
    ang = t * freqs                                         # (B, 32)
    emb_in = jnp.where(half_mask, jnp.sin(ang), jnp.cos(ang))  # [sin | cos]

    # Packed small weights / biases.
    small_w = smallw_ref[...]                 # (96, 32) f32
    w_emb_t = small_w[0:32, :]
    w1e_t = small_w[32:64, :]
    w2_t = small_w[64:96, :]
    bias3 = bias3_ref[...]                    # (3, 32) f32
    b_emb = bias3[0:1, :]
    b1 = bias3[1:2, :]
    b2 = bias3[2:3, :]

    # ---- emb: Linear(32, 32) + ReLU ----
    emb = jnp.dot(emb_in, w_emb_t, preferred_element_type=jnp.float32) + b_emb
    emb = jnp.maximum(emb, 0.0)               # (B, 32)

    # ---- model: Linear(IS + 32, 32) with the concat folded into a split matmul.
    # The big d0-part runs in bf16 on the MXU (f32 accumulation); the tiny
    # emb-part stays f32. d0 itself stays f32 for the elementwise tail.
    d0 = d0_ref[...]                          # (B, IS) f32
    h1 = (jnp.dot(d0.astype(jnp.bfloat16), w1d_ref[...],
                  preferred_element_type=jnp.float32)
          + jnp.dot(emb, w1e_t, preferred_element_type=jnp.float32)
          + b1)
    h1 = _leaky_relu(h1)

    # BatchNorm1d: freshly constructed module (training mode) -> batch stats
    # (biased variance), gamma=1, beta=0.  Kept in f32.
    mean = jnp.mean(h1, axis=0, keepdims=True)
    var = jnp.mean((h1 - mean) ** 2, axis=0, keepdims=True)
    h1 = (h1 - mean) * jax.lax.rsqrt(var + BN_EPS)

    # Linear(32, 32) + LeakyReLU
    h2 = jnp.dot(h1, w2_t, preferred_element_type=jnp.float32) + b2
    h2 = _leaky_relu(h2)

    # ---- df head: Linear(32, IS), bf16 weight, f32 accumulation + f32 bias ----
    df = (jnp.dot(h2.astype(jnp.bfloat16), wdf_ref[...],
                  preferred_element_type=jnp.float32)
          + bdf_ref[...])                     # (B, IS) f32

    # ---- Boltzmann elementwise tail (pure f32, matches torch formula) ----
    v0 = v0_ref[...]                          # (B, IS) f32
    kT = BOLTZ * T_CONST
    exponent = -(v0 * v0) / (2.0 * kT)
    coef = (0.5 * np.pi * kT) ** 1.5 * 4.0 * np.pi
    f = jax.nn.sigmoid(coef * (v0 * v0) * jnp.exp(exponent))
    dens_next = f + df                        # (B, IS)

    v1_ref[...] = v0 * (dens_next / d0)
    # d1[:, 0] = dens_next[ch0] + dens_next[ch1]; channels are contiguous
    # H*W blocks in the flat layout (hw is a multiple of 128 -> lane-aligned).
    d1_ref[...] = dens_next[:, :hw] + dens_next[:, hw:2 * hw]


def make_params(key, grid_h, grid_w, chs):
    """Deterministic parameter init matching the torch module's shapes."""
    input_size = grid_h * grid_w * chs
    ks = jax.random.split(key, 5)

    def linear(k, fan_in, fan_out):
        bound = 1.0 / np.sqrt(fan_in)
        kw, kb = jax.random.split(k)
        w = jax.random.uniform(kw, (fan_out, fan_in), jnp.float32, -bound, bound)
        b = jax.random.uniform(kb, (fan_out,), jnp.float32, -bound, bound)
        return w, b

    w_emb, b_emb = linear(ks[0], TIME_EMB_DIM, TIME_EMB_DIM)       # (32, 32)
    w1, b1 = linear(ks[1], input_size + TIME_EMB_DIM, 32)          # (32, IS+32)
    w2, b2 = linear(ks[2], 32, 32)                                 # (32, 32)
    # df_head: xavier_uniform_ weight, default bias init
    xb = np.sqrt(6.0 / (32 + input_size))
    wdf = jax.random.uniform(ks[3], (input_size, 32), jnp.float32, -xb, xb)
    bb = 1.0 / np.sqrt(32)
    bdf = jax.random.uniform(ks[4], (input_size,), jnp.float32, -bb, bb)

    # Pack the three small (32,32) weights into one slab, and the three (1,32)
    # biases into another, so the kernel takes fewer DMAs.  Transposed so the
    # kernel matmuls are (B, K) @ (K, N).
    small_w = jnp.concatenate([w_emb.T,                    # rows  0..31: emb
                               w1[:, input_size:].T,       # rows 32..63: w1 (emb part)
                               w2.T], axis=0)              # rows 64..95: w2
    bias3 = jnp.stack([b_emb, b1, b2], axis=0)             # (3, 32)

    return {
        "small_w": small_w.astype(jnp.float32),            # (96, 32) f32
        "bias3": bias3.astype(jnp.float32),                # (3, 32)  f32
        "w1d_bf": jnp.asarray(w1[:, :input_size].T, jnp.bfloat16),  # (IS, 32) bf16
        "wdf_bf": jnp.asarray(wdf.T, jnp.bfloat16),                  # (32, IS) bf16
        "bdf": bdf.reshape(1, -1).astype(jnp.float32),               # (1, IS)  f32
    }


@jax.jit
def simple_boltzmann_v2(d0, v0, dt, params):
    B, C, H, W = d0.shape
    input_size = C * H * W
    hw = H * W

    d0_flat = d0.reshape(B, input_size).astype(jnp.float32)
    v0_flat = v0.reshape(B, input_size).astype(jnp.float32)
    dt_flat = dt.reshape(B).astype(jnp.float32)

    kernel = functools.partial(boltzmann_kernel, hw=hw)
    vmem = pl.BlockSpec(memory_space=pltpu.MemorySpace.VMEM)
    smem = pl.BlockSpec(memory_space=pltpu.MemorySpace.SMEM)

    d1_flat, v1_flat = pl.pallas_call(
        kernel,
        out_shape=(jax.ShapeDtypeStruct((B, hw), jnp.float32),
                   jax.ShapeDtypeStruct((B, input_size), jnp.float32)),
        in_specs=[smem, vmem, vmem, vmem, vmem, vmem, vmem, vmem],
        out_specs=(vmem, vmem),
        compiler_params=pltpu.CompilerParams(vmem_limit_bytes=32 * 1024 * 1024),
    )(dt_flat, d0_flat, v0_flat,
      params["small_w"], params["bias3"],
      params["w1d_bf"], params["wdf_bf"], params["bdf"])

    d1_pred = d1_flat.reshape(B, 1, H, W)
    v1_pred = v1_flat.reshape(B, C, H, W)
    return d1_pred, v1_pred


if __name__ == "__main__":
    B, C, H, W = 2, 4, 16, 16          # grid_h=16, grid_w=16, chs=4 -> input_size=1024
    key = jax.random.PRNGKey(0)
    k1, k2, k3, kp = jax.random.split(key, 4)

    d0 = jax.random.uniform(k1, (B, C, H, W), jnp.float32, minval=0.5, maxval=1.5)
    v0 = jax.random.normal(k2, (B, C, H, W), dtype=jnp.float32)
    dt = jax.random.uniform(k3, (B,), jnp.float32, minval=0.0, maxval=10.0)

    params = make_params(kp, H, W, C)

    d1_pred, v1_pred = simple_boltzmann_v2(d0, v0, dt, params)
    jax.block_until_ready((d1_pred, v1_pred))

    assert d1_pred.shape == (B, 1, H, W)
    assert v1_pred.shape == (B, C, H, W)
    assert bool(jnp.all(jnp.isfinite(d1_pred))) and bool(jnp.all(jnp.isfinite(v1_pred)))
    print("KERNEL_OK")
</pallas_src>

<mosaic_0001>
module attributes {stable_mosaic.version = 11 : i64} {
  func.func @boltzmann_kernel(%arg0: memref<2xf32, #tpu.memory_space<smem>>, %arg1: memref<2x1024xf32, #tpu.memory_space<vmem>>, %arg2: memref<2x1024xf32, #tpu.memory_space<vmem>>, %arg3: memref<96x32xf32, #tpu.memory_space<vmem>>, %arg4: memref<3x32xf32, #tpu.memory_space<vmem>>, %arg5: memref<1024x32xbf16, #tpu.memory_space<vmem>>, %arg6: memref<32x1024xbf16, #tpu.memory_space<vmem>>, %arg7: memref<1x1024xf32, #tpu.memory_space<vmem>>, %arg8: memref<2x256xf32, #tpu.memory_space<vmem>>, %arg9: memref<2x1024xf32, #tpu.memory_space<vmem>>) attributes {dimension_semantics = [], scalar_prefetch = 0 : i64, scratch_operands = 0 : i64, tpu.core_type = #tpu.core_type<tc>} {
    %0 = tpu.iota {dimensions = array<i32: 0>} : vector<2x32xi32>
    %cst = arith.constant 0.000000e+00 : f32
    %1 = vector.broadcast %cst : f32 to vector<2x32xf32>
    %c0_i32 = arith.constant 0 : i32
    %2 = vector.broadcast %c0_i32 : i32 to vector<2x32xi32>
    %3 = arith.cmpi eq, %0, %2 : vector<2x32xi32>
    %c0 = arith.constant 0 : index
    %4 = memref.load %arg0[%c0] : memref<2xf32, #tpu.memory_space<smem>>
    %5 = vector.broadcast %4 : f32 to vector<2x32xf32>
    %6 = arith.select %3, %5, %1 : vector<2x32xi1>, vector<2x32xf32>
    %c1_i32 = arith.constant 1 : i32
    %7 = vector.broadcast %c1_i32 : i32 to vector<2x32xi32>
    %8 = arith.cmpi eq, %0, %7 : vector<2x32xi32>
    %c1 = arith.constant 1 : index
    %9 = memref.load %arg0[%c1] : memref<2xf32, #tpu.memory_space<smem>>
    %10 = vector.broadcast %9 : f32 to vector<2x32xf32>
    %11 = arith.select %8, %10, %6 : vector<2x32xi1>, vector<2x32xf32>
    %12 = tpu.iota {dimensions = array<i32: 1>} : vector<2x32xi32>
    %c16_i32 = arith.constant 16 : i32
    %13 = vector.broadcast %c16_i32 : i32 to vector<2x32xi32>
    %14 = arith.cmpi slt, %12, %13 : vector<2x32xi32>
    %c16_i32_0 = arith.constant 16 : i32
    %15 = vector.broadcast %c16_i32_0 : i32 to vector<2x32xi32>
    %16 = arith.subi %12, %15 : vector<2x32xi32>
    %17 = arith.select %14, %12, %16 : vector<2x32xi1>, vector<2x32xi32>
    %18 = arith.sitofp %17 : vector<2x32xi32> to vector<2x32xf32>
    %cst_1 = arith.constant -0.614022672 : f32
    %19 = vector.broadcast %cst_1 : f32 to vector<2x32xf32>
    %20 = arith.mulf %18, %19 : vector<2x32xf32>
    %21 = math.exp %20 : vector<2x32xf32>
    %22 = arith.mulf %11, %21 : vector<2x32xf32>
    %23 = math.sin %22 : vector<2x32xf32>
    %24 = math.cos %22 : vector<2x32xf32>
    %25 = arith.select %14, %23, %24 : vector<2x32xi1>, vector<2x32xf32>
    %c0_2 = arith.constant 0 : index
    %c0_3 = arith.constant 0 : index
    %26 = vector.load %arg3[%c0_2, %c0_3] : memref<96x32xf32, #tpu.memory_space<vmem>>, vector<96x32xf32>
    %27 = vector.extract_strided_slice %26 {offsets = [0, 0], sizes = [32, 32], strides = [1, 1]} : vector<96x32xf32> to vector<32x32xf32>
    %28 = vector.extract_strided_slice %26 {offsets = [32, 0], sizes = [32, 32], strides = [1, 1]} : vector<96x32xf32> to vector<32x32xf32>
    %29 = vector.extract_strided_slice %26 {offsets = [64, 0], sizes = [32, 32], strides = [1, 1]} : vector<96x32xf32> to vector<32x32xf32>
    %c0_4 = arith.constant 0 : index
    %c0_5 = arith.constant 0 : index
    %30 = vector.load %arg4[%c0_4, %c0_5] : memref<3x32xf32, #tpu.memory_space<vmem>>, vector<3x32xf32>
    %31 = vector.extract_strided_slice %30 {offsets = [0, 0], sizes = [1, 32], strides = [1, 1]} : vector<3x32xf32> to vector<1x32xf32>
    %32 = vector.extract_strided_slice %30 {offsets = [1, 0], sizes = [1, 32], strides = [1, 1]} : vector<3x32xf32> to vector<1x32xf32>
    %33 = vector.extract_strided_slice %30 {offsets = [2, 0], sizes = [1, 32], strides = [1, 1]} : vector<3x32xf32> to vector<1x32xf32>
    %cst_6 = arith.constant dense<0.000000e+00> : vector<2x32xf32>
    %34 = tpu.matmul %25, %27, %cst_6 {dimension_numbers = #tpu.dot_dimension_numbers<[1], [0], [0], [1], [0, 0, 1, 1], [], []>} : vector<2x32xf32>, vector<32x32xf32>, vector<2x32xf32> -> vector<2x32xf32>
    %35 = vector.broadcast %31 : vector<1x32xf32> to vector<2x32xf32>
    %36 = arith.addf %34, %35 : vector<2x32xf32>
    %cst_7 = arith.constant 0.000000e+00 : f32
    %37 = vector.broadcast %cst_7 : f32 to vector<2x32xf32>
    %38 = arith.maximumf %36, %37 : vector<2x32xf32>
    %c0_8 = arith.constant 0 : index
    %c0_9 = arith.constant 0 : index
    %39 = vector.load %arg1[%c0_8, %c0_9] : memref<2x1024xf32, #tpu.memory_space<vmem>>, vector<2x1024xf32>
    %40 = arith.truncf %39 : vector<2x1024xf32> to vector<2x1024xbf16>
    %c0_10 = arith.constant 0 : index
    %c0_11 = arith.constant 0 : index
    %41 = vector.load %arg5[%c0_10, %c0_11] : memref<1024x32xbf16, #tpu.memory_space<vmem>>, vector<1024x32xbf16>
    %cst_12 = arith.constant dense<0.000000e+00> : vector<2x32xf32>
    %42 = tpu.matmul %40, %41, %cst_12 {dimension_numbers = #tpu.dot_dimension_numbers<[1], [0], [0], [1], [0, 0, 1, 1], [], []>} : vector<2x1024xbf16>, vector<1024x32xbf16>, vector<2x32xf32> -> vector<2x32xf32>
    %cst_13 = arith.constant dense<0.000000e+00> : vector<2x32xf32>
    %43 = tpu.matmul %38, %28, %cst_13 {dimension_numbers = #tpu.dot_dimension_numbers<[1], [0], [0], [1], [0, 0, 1, 1], [], []>} : vector<2x32xf32>, vector<32x32xf32>, vector<2x32xf32> -> vector<2x32xf32>
    %44 = arith.addf %42, %43 : vector<2x32xf32>
    %45 = vector.broadcast %32 : vector<1x32xf32> to vector<2x32xf32>
    %46 = arith.addf %44, %45 : vector<2x32xf32>
    %cst_14 = arith.constant 0.000000e+00 : f32
    %47 = vector.broadcast %cst_14 : f32 to vector<2x32xf32>
    %48 = arith.cmpf oge, %46, %47 : vector<2x32xf32>
    %cst_15 = arith.constant 0.00999999977 : f32
    %49 = vector.broadcast %cst_15 : f32 to vector<2x32xf32>
    %50 = arith.mulf %49, %46 : vector<2x32xf32>
    %51 = arith.select %48, %46, %50 : vector<2x32xi1>, vector<2x32xf32>
    %cst_16 = arith.constant dense<0.000000e+00> : vector<32xf32>
    %52 = vector.multi_reduction <add>, %51, %cst_16 [0] : vector<2x32xf32> to vector<32xf32>
    %53 = vector.shape_cast %52 : vector<32xf32> to vector<1x32xf32>
    %cst_17 = arith.constant 2.000000e+00 : f32
    %54 = vector.broadcast %cst_17 : f32 to vector<1x32xf32>
    %55 = arith.divf %53, %54 : vector<1x32xf32>
    %56 = vector.broadcast %55 : vector<1x32xf32> to vector<2x32xf32>
    %57 = arith.subf %51, %56 : vector<2x32xf32>
    %58 = arith.mulf %57, %57 : vector<2x32xf32>
    %cst_18 = arith.constant dense<0.000000e+00> : vector<32xf32>
    %59 = vector.multi_reduction <add>, %58, %cst_18 [0] : vector<2x32xf32> to vector<32xf32>
    %60 = vector.shape_cast %59 : vector<32xf32> to vector<1x32xf32>
    %cst_19 = arith.constant 2.000000e+00 : f32
    %61 = vector.broadcast %cst_19 : f32 to vector<1x32xf32>
    %62 = arith.divf %60, %61 : vector<1x32xf32>
    %63 = vector.broadcast %55 : vector<1x32xf32> to vector<2x32xf32>
    %64 = arith.subf %51, %63 : vector<2x32xf32>
    %cst_20 = arith.constant 9.99999974E-6 : f32
    %65 = vector.broadcast %cst_20 : f32 to vector<1x32xf32>
    %66 = arith.addf %62, %65 : vector<1x32xf32>
    %67 = math.rsqrt %66 : vector<1x32xf32>
    %68 = vector.broadcast %67 : vector<1x32xf32> to vector<2x32xf32>
    %69 = arith.mulf %64, %68 : vector<2x32xf32>
    %cst_21 = arith.constant dense<0.000000e+00> : vector<2x32xf32>
    %70 = tpu.matmul %69, %29, %cst_21 {dimension_numbers = #tpu.dot_dimension_numbers<[1], [0], [0], [1], [0, 0, 1, 1], [], []>} : vector<2x32xf32>, vector<32x32xf32>, vector<2x32xf32> -> vector<2x32xf32>
    %71 = vector.broadcast %33 : vector<1x32xf32> to vector<2x32xf32>
    %72 = arith.addf %70, %71 : vector<2x32xf32>
    %cst_22 = arith.constant 0.000000e+00 : f32
    %73 = vector.broadcast %cst_22 : f32 to vector<2x32xf32>
    %74 = arith.cmpf oge, %72, %73 : vector<2x32xf32>
    %cst_23 = arith.constant 0.00999999977 : f32
    %75 = vector.broadcast %cst_23 : f32 to vector<2x32xf32>
    %76 = arith.mulf %75, %72 : vector<2x32xf32>
    %77 = arith.select %74, %72, %76 : vector<2x32xi1>, vector<2x32xf32>
    %78 = arith.truncf %77 : vector<2x32xf32> to vector<2x32xbf16>
    %c0_24 = arith.constant 0 : index
    %c0_25 = arith.constant 0 : index
    %79 = vector.load %arg6[%c0_24, %c0_25] : memref<32x1024xbf16, #tpu.memory_space<vmem>>, vector<32x1024xbf16>
    %cst_26 = arith.constant dense<0.000000e+00> : vector<2x1024xf32>
    %80 = tpu.matmul %78, %79, %cst_26 {dimension_numbers = #tpu.dot_dimension_numbers<[1], [0], [0], [1], [0, 0, 1, 1], [], []>} : vector<2x32xbf16>, vector<32x1024xbf16>, vector<2x1024xf32> -> vector<2x1024xf32>
    %c0_27 = arith.constant 0 : index
    %c0_28 = arith.constant 0 : index
    %81 = vector.load %arg7[%c0_27, %c0_28] : memref<1x1024xf32, #tpu.memory_space<vmem>>, vector<1x1024xf32>
    %82 = vector.broadcast %81 : vector<1x1024xf32> to vector<2x1024xf32>
    %83 = arith.addf %80, %82 : vector<2x1024xf32>
    %c0_29 = arith.constant 0 : index
    %c0_30 = arith.constant 0 : index
    %84 = vector.load %arg2[%c0_29, %c0_30] : memref<2x1024xf32, #tpu.memory_space<vmem>>, vector<2x1024xf32>
    %85 = arith.mulf %84, %84 : vector<2x1024xf32>
    %cst_31 = arith.constant 0.000000e+00 : f32
    %86 = vector.broadcast %cst_31 : f32 to vector<2x1024xf32>
    %87 = arith.subf %86, %85 : vector<2x1024xf32>
    %cst_32 = arith.constant 8.28389394E-21 : f32
    %88 = vector.broadcast %cst_32 : f32 to vector<2x1024xf32>
    %89 = arith.divf %87, %88 : vector<2x1024xf32>
    %90 = arith.mulf %84, %84 : vector<2x1024xf32>
    %cst_33 = arith.constant 6.59472192E-30 : f32
    %91 = vector.broadcast %cst_33 : f32 to vector<2x1024xf32>
    %92 = arith.mulf %91, %90 : vector<2x1024xf32>
    %93 = math.exp %89 : vector<2x1024xf32>
    %94 = arith.mulf %92, %93 : vector<2x1024xf32>
    %95 = arith.negf %94 : vector<2x1024xf32>
    %96 = math.exp %95 : vector<2x1024xf32>
    %cst_34 = arith.constant 1.000000e+00 : f32
    %97 = vector.broadcast %cst_34 : f32 to vector<2x1024xf32>
    %98 = arith.addf %97, %96 : vector<2x1024xf32>
    %99 = arith.divf %97, %98 : vector<2x1024xf32>
    %100 = arith.addf %99, %83 : vector<2x1024xf32>
    %101 = arith.divf %100, %39 : vector<2x1024xf32>
    %102 = arith.mulf %84, %101 : vector<2x1024xf32>
    %c0_35 = arith.constant 0 : index
    %c0_36 = arith.constant 0 : index
    %103 = vector.load %arg9[%c0_35, %c0_36] : memref<2x1024xf32, #tpu.memory_space<vmem>>, vector<2x1024xf32>
    tpu.vector_store %arg9[%c0_35, %c0_36], %102 {strides = array<i32>} : memref<2x1024xf32, #tpu.memory_space<vmem>>, vector<2x1024xf32>,
    %104 = vector.extract_strided_slice %100 {offsets = [0, 0], sizes = [2, 256], strides = [1, 1]} : vector<2x1024xf32> to vector<2x256xf32>
    %105 = vector.extract_strided_slice %100 {offsets = [0, 256], sizes = [2, 256], strides = [1, 1]} : vector<2x1024xf32> to vector<2x256xf32>
    %106 = arith.addf %104, %105 : vector<2x256xf32>
    %c0_37 = arith.constant 0 : index
    %c0_38 = arith.constant 0 : index
    %107 = vector.load %arg8[%c0_37, %c0_38] : memref<2x256xf32, #tpu.memory_space<vmem>>, vector<2x256xf32>
    tpu.vector_store %arg8[%c0_37, %c0_38], %106 {strides = array<i32>} : memref<2x256xf32, #tpu.memory_space<vmem>>, vector<2x256xf32>,
    return
  }
}

</mosaic_0001>

<llo_original>
// kernel: simple_boltzmann_v2.1
$region0: #{simple_boltzmann_v2.1}
  #allocation0 [shape = 'u32[]', space=smem, size = 0x4, offset = 0x4, fixed_abs, tag = 'smem constant byte address 0x4 - core index']
  #allocation1 [shape = 'u32[144,128]{1,0:T(1,128)}', space=vmem, size = 0x12000, scoped, tag = 'internal scratch']
  %s0 = inlined_call_operand.vmem [shape: f32[2], index: 0, kind: input, shape index: {}]
  %s1 = inlined_call_operand.vmem [shape: f32[2,1024], index: 1, kind: input, shape index: {}]
  %s2 = inlined_call_operand.vmem [shape: f32[2,1024], index: 2, kind: input, shape index: {}]
  %s3 = inlined_call_operand.vmem [shape: f32[96,32], index: 3, kind: input, shape index: {}]
  %s4 = inlined_call_operand.vmem [shape: f32[3,32], index: 4, kind: input, shape index: {}]
  %s5 = inlined_call_operand.vmem [shape: bf16[1024,32], index: 5, kind: input, shape index: {}]
  %s6 = inlined_call_operand.vmem [shape: bf16[32,1024], index: 6, kind: input, shape index: {}]
  %s7 = inlined_call_operand.vmem [shape: f32[1,1024], index: 7, kind: input, shape index: {}]
  %s8 = inlined_call_operand.vmem [shape: f32[2,256], index: 8, kind: output, shape index: {0}]
  %s9 = inlined_call_operand.vmem [shape: f32[2,1024], index: 9, kind: output, shape index: {1}]
  %10 = xla_tuple %s8, %s9
  %s11 = sld [smem:[#allocation0]]
  $region54: #{simple_boltzmann_v2.1} parent=0
    _
  %s13 = ssub.s32 1, %s11
  %s14 = scalar_select 0, %s13, %s11
  $region1: #{simple_boltzmann_v2.1} parent=0
    #allocation2 [shape = 'u8[512]{0}', space=smem, size = 0x200, scoped, tag = 'input window, operand 0, single buffered']
    #allocation3 [shape = 's32[1]{0}', space=sflag, size = 0x4, scoped, tag = 'scoped memory for simple_boltzmann_v2.1']
    %15 = vsyncpa [#allocation3], 0
    // Predicated region
    $region2: #{simple_boltzmann_v2.1} parent=1 // pred_check
      _
    $region3: #{simple_boltzmann_v2.1} parent=1 // pred_check_branch
      %17 = sbr.rel (0) target = $region5
    $region4: #{simple_boltzmann_v2.1} parent=1 // pred_region
      %s19 = ssub.s32 16, 16
      %20 = vsyncadd [#allocation3], %s19
      %s22 = sshll.u32 %s0, 4
      %s23 = int_to_ptr.vmem [resolvable:$true] %s22
      %25 = dma.vmem_to_smem %s23, 16, [#allocation2], [#allocation3]
    $region5: #{simple_boltzmann_v2.1} parent=1 // pred_fallthru
      _
    // Predicated region
    $region6: #{simple_boltzmann_v2.1} parent=1 // pred_check
      _
    $region7: #{simple_boltzmann_v2.1} parent=1 // pred_check_branch
      %27 = sbr.rel (0) target = $region9
    $region8: #{simple_boltzmann_v2.1} parent=1 // pred_region
      _
    $region9: #{simple_boltzmann_v2.1} parent=1 // pred_fallthru
      _
    // Predicated region
    $region10: #{simple_boltzmann_v2.1} parent=1 // pred_check
      _
    $region11: #{simple_boltzmann_v2.1} parent=1 // pred_check_branch
      %29 = sbr.rel (0) target = $region13
    $region12: #{simple_boltzmann_v2.1} parent=1 // pred_region
      _
    $region13: #{simple_boltzmann_v2.1} parent=1 // pred_fallthru
      _
    // Predicated region
    $region14: #{simple_boltzmann_v2.1} parent=1 // pred_check
      _
    $region15: #{simple_boltzmann_v2.1} parent=1 // pred_check_branch
      %31 = sbr.rel (0) target = $region17
    $region16: #{simple_boltzmann_v2.1} parent=1 // pred_region
      _
    $region17: #{simple_boltzmann_v2.1} parent=1 // pred_fallthru
      _
    // Predicated region
    $region18: #{simple_boltzmann_v2.1} parent=1 // pred_check
      _
    $region19: #{simple_boltzmann_v2.1} parent=1 // pred_check_branch
      %33 = sbr.rel (0) target = $region21
    $region20: #{simple_boltzmann_v2.1} parent=1 // pred_region
      _
    $region21: #{simple_boltzmann_v2.1} parent=1 // pred_fallthru
      _
    // Predicated region
    $region22: #{simple_boltzmann_v2.1} parent=1 // pred_check
      _
    $region23: #{simple_boltzmann_v2.1} parent=1 // pred_check_branch
      %35 = sbr.rel (0) target = $region25
    $region24: #{simple_boltzmann_v2.1} parent=1 // pred_region
      _
    $region25: #{simple_boltzmann_v2.1} parent=1 // pred_fallthru
      _
    // Predicated region
    $region26: #{simple_boltzmann_v2.1} parent=1 // pred_check
      _
    $region27: #{simple_boltzmann_v2.1} parent=1 // pred_check_branch
      %37 = sbr.rel (0) target = $region29
    $region28: #{simple_boltzmann_v2.1} parent=1 // pred_region
      _
    $region29: #{simple_boltzmann_v2.1} parent=1 // pred_fallthru
      _
    // Predicated region
    $region30: #{simple_boltzmann_v2.1} parent=1 // pred_check
      _
    $region31: #{simple_boltzmann_v2.1} parent=1 // pred_check_branch
      %39 = sbr.rel (0) target = $region33
    $region32: #{simple_boltzmann_v2.1} parent=1 // pred_region
      _
    $region33: #{simple_boltzmann_v2.1} parent=1 // pred_fallthru
      _
    // Predicated region
    $region34: #{simple_boltzmann_v2.1} parent=1 // pred_check
      _
    $region35: #{simple_boltzmann_v2.1} parent=1 // pred_check_branch
      %41 = sbr.rel (0) target = $region37
    $region36: #{simple_boltzmann_v2.1} parent=1 // pred_region
      %42 = dma.done [#allocation3], 16
    $region37: #{simple_boltzmann_v2.1} parent=1 // pred_fallthru
      _
    %43 = sfence
    %v45 = vlaneseq
    %v46 = vshrl.u32 %v45, 7
    %vm47 = vcmp.eq.s32.totalorder %v46, 0
    %s48 = sld [smem:[#allocation2]]
    %v49 = vstv %s48
    %v50 = vsel %vm47, %v49, 0.0
    %vm51 = vcmp.eq.s32.totalorder %v46, 1
    %s52 = sld [smem:[#allocation2 + $0x1]]
    %v53 = vstv %s52
    %v54 = vsel %vm51, %v53, %v50
    %v55 = vlaneseq
    %v56 = vand.u32 %v55, 127
    %vm57 = vcmp.lt.s32.totalorder %v56, 16
    %v58 = vsub.s32 %v56, 16
    %v59 = vsel %vm57, %v56, %v58
    %v60 = vcvt.s32.f32 %v59
    %v61 = vmul.f32 %v60, -0.6140227
    %v62 = vmul.f32 %v61, 1.442695
    %v63 = vpow.pop %v62
    %v64 = vmul.f32 %v54, %v63
    %v65 = vand.u32 2147483647, %v64
    %vm66 = vcmp.le.f32.partialorder %v65, 0.7853982
    %vm67 = vcmp.lt.s32.totalorder %v64, 0
    %v68 = vand.u32 %v64, 2139095040
    %v69 = vshrl.u32 %v68, 23
    %v70 = vsub.s32 %v69, 127
    %v71 = vand.u32 2147483647, %v64
    %v72 = vand.u32 %v71, 8388607
    %v73 = vor.u32 %v72, 8388608
    %v74 = vsub.s32 0, %v73
    %v75 = vadd.s32 %v70, 1
    %vm76 = vcmp.gt.s32.totalorder %v75, 0
    %v77 = vsel %vm76, %v75, 0
    %v78 = vshrl.u32 %v77, 5
    %v79 = vand.u32 %v77, 31
    %v80 = vsub.s32 32, %v79
    %v81 = vshrl.u32 683565275, %v80
    %v82 = vshll.u32 683565275, %v79
    %v83 = vshrl.u32 2475754826, %v80
    %v84 = vor.u32 %v82, %v83
    %v85 = vshll.u32 2475754826, %v79
    %v86 = vshrl.u32 2131351028, %v80
    %v87 = vor.u32 %v85, %v86
    %v88 = vshll.u32 2131351028, %v79
    %v89 = vshrl.u32 2102212464, %v80
    %v90 = vor.u32 %v88, %v89
    %v91 = vshll.u32 2102212464, %v79
    %v92 = vshrl.u32 920167782, %v80
    %v93 = vor.u32 %v91, %v92
    %v94 = vshll.u32 920167782, %v79
    %v95 = vshrl.u32 1326507024, %v80
    %v96 = vor.u32 %v94, %v95
    %vm97 = vcmp.lt.s32.totalorder %v78, 1
    %vm98 = vcmp.lt.s32.totalorder %v78, 2
    %vm99 = vcmp.lt.s32.totalorder %v78, 3
    %vm100 = vcmp.lt.s32.totalorder %v78, 4
    %v101 = vsel %vm97, %v81, %v84
    %v102 = vsel %vm100, %v90, 2102212464
    %v103 = vsel %vm99, %v87, %v102
    %v104 = vsel %vm98, %v101, %v103
    %v105 = vsel %vm97, %v84, %v87
    %v106 = vsel %vm100, %v93, 920167782
    %v107 = vsel %vm99, %v90, %v106
    %v108 = vsel %vm98, %v105, %v107
    %v109 = vsel %vm97, %v87, %v90
    %v110 = vsel %vm100, %v96, 1326507024
    %v111 = vsel %vm99, %v93, %v110
    %v112 = vsel %vm98, %v109, %v111
    %v113 = vshll.u32 %v73, 8
    %v114 = vmul.u32.u64.compose %v113, %v112
    %v115 = vextract.low.u32 %v114
    %v116 = vextract.high.u32 %v114
    %v117 = vmul.u32.u64.compose %v113, %v108
    %v118 = vextract.low.u32 %v117
    %v119 = vextract.high.u32 %v117
    %v120 = vmul.u32 %v113, %v104
    %v121 = vadd.s32 %v116, %v118
    %vm122 = vc.u32 %v116, %v118
    %v123 = vadd.s32 %v119, 1
    %v124 = vsel %vm122, %v123, %v119
    %v125 = vadd.s32 %v120, %v124
    %v126 = vadd.s32 %v125, 536870912
    %v127 = vshrl.u32 %v126, 30
    %v128 = vshll.u32 %v127, 30
    %v129 = vsub.s32 %v125, %v128
    %vm130 = vcmp.lt.s32.totalorder %v129, 0
    %v131 = vsub.s32 0, %v129
    %v132 = vsel %vm130, %v131, %v129
    %v133 = vclz %v132
    %v134 = vsub.s32 %v133, 2
    %vm135 = vcmp.gt.s32.totalorder 0, %v134
    %v136 = vsel %vm135, 0, %v134
    %v137 = vsub.s32 32, %v136
    %v138 = vshll.u32 %v129, %v136
    %v139 = vshrl.u32 %v121, %v137
    %v140 = vor.u32 %v138, %v139
    %v141 = vsub.s32 4294967266, %v136
    %v142 = vadd.s32 %v141, 127
    %v143 = vshll.u32 %v142, 23
    %v144 = vor.u32 4788187, %v143
    %v145 = vand.u32 2147483647, %v144
    %v147 = vcvt.s32.f32 %v140
    %v148 = vmul.f32 %v147, %v145
    %v149 = vxor.u32 %v148, 2147483648
    %v150 = vsel %vm67, %v149, %v148
    %v151 = vsub.s32 4, %v127
    %v152 = vsel %vm67, %v151, %v127
    %v153 = vsel %vm66, %v64, %v150
    %v154 = vsel %vm66, 0, %v152
    %v155 = vcosq.f32.pop %v153
    %v156 = vsinq.f32.pop %v153
    %vm157 = vweird.f32 %v64
    %v158 = vadd.s32 %v154, 3
    %v159 = vand.u32 %v158, 3
    %vm160 = vcmp.lt.s32.totalorder %v159, 2
    %vm161 = vcmp.eq.s32.totalorder %v159, 0
    %v162 = vxor.u32 %v156, 2147483648
    %v163 = vsel %vm161, %v155, %v162
    %vm164 = vcmp.eq.s32.totalorder %v159, 2
    %v165 = vxor.u32 %v155, 2147483648
    %v166 = vsel %vm164, %v165, %v156
    %v167 = vsel %vm160, %v163, %v166
    %v168 = vsel %vm157, nan, %v167
    %v169 = vand.u32 2147483647, %v64
    %vm170 = vcmp.le.f32.partialorder %v169, 0.7853982
    %vm171 = vcmp.lt.s32.totalorder %v64, 0
    %v172 = vand.u32 %v64, 2139095040
    %v173 = vshrl.u32 %v172, 23
    %v174 = vsub.s32 %v173, 127
    %v175 = vand.u32 2147483647, %v64
    %v176 = vand.u32 %v175, 8388607
    %v177 = vor.u32 %v176, 8388608
    %v178 = vsub.s32 0, %v177
    %v179 = vadd.s32 %v174, 1
    %vm180 = vcmp.gt.s32.totalorder %v179, 0
    %v181 = vsel %vm180, %v179, 0
    %v182 = vshrl.u32 %v181, 5
    %v183 = vand.u32 %v181, 31
    %v184 = vsub.s32 32, %v183
    %v185 = vshrl.u32 683565275, %v184
    %v186 = vshll.u32 683565275, %v183
    %v187 = vshrl.u32 2475754826, %v184
    %v188 = vor.u32 %v186, %v187
    %v189 = vshll.u32 2475754826, %v183
    %v190 = vshrl.u32 2131351028, %v184
    %v191 = vor.u32 %v189, %v190
    %v192 = vshll.u32 2131351028, %v183
    %v193 = vshrl.u32 2102212464, %v184
    %v194 = vor.u32 %v192, %v193
    %v195 = vshll.u32 2102212464, %v183
    %v196 = vshrl.u32 920167782, %v184
    %v197 = vor.u32 %v195, %v196
    %v198 = vshll.u32 920167782, %v183
    %v199 = vshrl.u32 1326507024, %v184
    %v200 = vor.u32 %v198, %v199
    %vm201 = vcmp.lt.s32.totalorder %v182, 1
    %vm202 = vcmp.lt.s32.totalorder %v182, 2
    %vm203 = vcmp.lt.s32.totalorder %v182, 3
    %vm204 = vcmp.lt.s32.totalorder %v182, 4
    %v205 = vsel %vm201, %v185, %v188
    %v206 = vsel %vm204, %v194, 2102212464
    %v207 = vsel %vm203, %v191, %v206
    %v208 = vsel %vm202, %v205, %v207
    %v209 = vsel %vm201, %v188, %v191
    %v210 = vsel %vm204, %v197, 920167782
    %v211 = vsel %vm203, %v194, %v210
    %v212 = vsel %vm202, %v209, %v211
    %v213 = vsel %vm201, %v191, %v194
    %v214 = vsel %vm204, %v200, 1326507024
    %v215 = vsel %vm203, %v197, %v214
    %v216 = vsel %vm202, %v213, %v215
    %v217 = vshll.u32 %v177, 8
    %v218 = vmul.u32.u64.compose %v217, %v216
    %v219 = vextract.low.u32 %v218
    %v220 = vextract.high.u32 %v218
    %v221 = vmul.u32.u64.compose %v217, %v212
    %v222 = vextract.low.u32 %v221
    %v223 = vextract.high.u32 %v221
    %v224 = vmul.u32 %v217, %v208
    %v225 = vadd.s32 %v220, %v222
    %vm226 = vc.u32 %v220, %v222
    %v227 = vadd.s32 %v223, 1
    %v228 = vsel %vm226, %v227, %v223
    %v229 = vadd.s32 %v224, %v228
    %v230 = vadd.s32 %v229, 536870912
    %v231 = vshrl.u32 %v230, 30
    %v232 = vshll.u32 %v231, 30
    %v233 = vsub.s32 %v229, %v232
    %vm234 = vcmp.lt.s32.totalorder %v233, 0
    %v235 = vsub.s32 0, %v233
    %v236 = vsel %vm234, %v235, %v233
    %v237 = vclz %v236
    %v238 = vsub.s32 %v237, 2
    %vm239 = vcmp.gt.s32.totalorder 0, %v238
    %v240 = vsel %vm239, 0, %v238
    %v241 = vsub.s32 32, %v240
    %v242 = vshll.u32 %v233, %v240
    %v243 = vshrl.u32 %v225, %v241
    %v244 = vor.u32 %v242, %v243
    %v245 = vsub.s32 4294967266, %v240
    %v246 = vadd.s32 %v245, 127
    %v247 = vshll.u32 %v246, 23
    %v248 = vor.u32 4788187, %v247
    %v249 = vand.u32 2147483647, %v248
    %v251 = vcvt.s32.f32 %v244
    %v252 = vmul.f32 %v251, %v249
    %v253 = vxor.u32 %v252, 2147483648
    %v254 = vsel %vm171, %v253, %v252
    %v255 = vsub.s32 4, %v231
    %v256 = vsel %vm171, %v255, %v231
    %v257 = vsel %vm170, %v64, %v254
    %v258 = vsel %vm170, 0, %v256
    %v259 = vcosq.f32.pop %v257
    %v260 = vsinq.f32.pop %v257
    %vm261 = vweird.f32 %v64
    %v262 = vand.u32 %v258, 3
    %vm263 = vcmp.lt.s32.totalorder %v262, 2
    %vm264 = vcmp.eq.s32.totalorder %v262, 0
    %v265 = vxor.u32 %v260, 2147483648
    %v266 = vsel %vm264, %v259, %v265
    %vm267 = vcmp.eq.s32.totalorder %v262, 2
    %v268 = vxor.u32 %v259, 2147483648
    %v269 = vsel %vm267, %v268, %v260
    %v270 = vsel %vm263, %v266, %v269
    %v271 = vsel %vm261, nan, %v270
    %v272 = vsel %vm57, %v168, %v271
    %v273 = vld [vmem:[%s3] sm:$0xff]
    %v274 = vld [vmem:[%s3 + $0x8] sm:$0xff]
    %v275 = vld [vmem:[%s3 + $0x10] sm:$0xff]
    %v276 = vld [vmem:[%s3 + $0x18] sm:$0xff]
    %v277 = vld [vmem:[%s3 + $0x20] sm:$0xff]
    %v278 = vld [vmem:[%s3 + $0x28] sm:$0xff]
    %v279 = vld [vmem:[%s3 + $0x30] sm:$0xff]
    %v280 = vld [vmem:[%s3 + $0x38] sm:$0xff]
    %v281 = vld [vmem:[%s3 + $0x40] sm:$0xff]
    %v282 = vld [vmem:[%s3 + $0x48] sm:$0xff]
    %v283 = vld [vmem:[%s3 + $0x50] sm:$0xff]
    %v284 = vld [vmem:[%s3 + $0x58] sm:$0xff]
    %v285 = vld [vmem:[%s4] sm:$0x7]
    %v286 = vlaneseq
    %v287 = vshrl.u32 %v286, 7
    %v288 = vsub.s32 0, %v287
    %v289 = vrot.slane %v285, %v288
    %vm290 = vcmask 261120
    %v292 = vsel %vm290, %v272, 0
    %294 = vmatprep.subr.mxu0 0.0
    %295 = vmatpush1.msra.mxu0 0.0
    %296 = vmatprep.subr.mxu0 0.0
    %297 = vmatpush1.msra.mxu0 0.0
    %298 = vmatprep.subr.mxu0 0.0
    %299 = vmatpush1.msra.mxu0 0.0
    %300 = vmatprep.subr.mxu0 0.0
    %301 = vmatpush1.msra.mxu0 0.0
    %302 = vmatprep.subr.mxu0 0.0
    %303 = vmatpush1.msra.mxu0 0.0
    %304 = vmatprep.subr.mxu0 0.0
    %305 = vmatpush1.msra.mxu0 0.0
    %306 = vmatprep.subr.mxu0 0.0
    %307 = vmatpush1.msra.mxu0 0.0
    %308 = vmatprep.subr.mxu0 0.0
    %309 = vmatpush1.msra.mxu0 0.0
    %310 = vmatprep.subr.mxu0 0.0
    %311 = vmatpush1.msra.mxu0 0.0
    %312 = vmatprep.subr.mxu0 0.0
    %313 = vmatpush1.msra.mxu0 0.0
    %314 = vmatprep.subr.mxu0 0.0
    %315 = vmatpush1.msra.mxu0 0.0
    %316 = vmatprep.subr.mxu0 0.0
    %317 = vmatpush1.msra.mxu0 0.0
    %318 = vmatprep.subr.mxu0 0.0
    %319 = vmatpush1.msra.mxu0 %v276
    %320 = vmatprep.subr.mxu0 0.0
    %321 = vmatpush1.msra.mxu0 %v275
    %322 = vmatprep.subr.mxu0 0.0
    %323 = vmatpush1.msra.mxu0 %v274
    %324 = vmatprep.subr.mxu0 0.0
    %325 = vmatpush1.msra.mxu0 %v273
    %326 = vmatprep.subr.mxu0 0.0
    %327 = vmatpush2.msra.mxu0 0.0
    %328 = vmatprep.subr.mxu0 0.0
    %329 = vmatpush2.msra.mxu0 0.0
    %330 = vmatprep.subr.mxu0 0.0
    %331 = vmatpush2.msra.mxu0 0.0
    %332 = vmatprep.subr.mxu0 0.0
    %333 = vmatpush2.msra.mxu0 0.0
    %334 = vmatprep.subr.mxu0 0.0
    %335 = vmatpush2.msra.mxu0 0.0
    %336 = vmatprep.subr.mxu0 0.0
    %337 = vmatpush2.msra.mxu0 0.0
    %338 = vmatprep.subr.mxu0 0.0
    %339 = vmatpush2.msra.mxu0 0.0
    %340 = vmatprep.subr.mxu0 0.0
    %341 = vmatpush2.msra.mxu0 0.0
    %342 = vmatprep.subr.mxu0 0.0
    %343 = vmatpush2.msra.mxu0 0.0
    %344 = vmatprep.subr.mxu0 0.0
    %345 = vmatpush2.msra.mxu0 0.0
    %346 = vmatprep.subr.mxu0 0.0
    %347 = vmatpush2.msra.mxu0 0.0
    %348 = vmatprep.subr.mxu0 0.0
    %349 = vmatpush2.msra.mxu0 0.0
    %350 = vmatprep.subr.mxu0 0.0
    %351 = vmatpush2.msra.mxu0 0.0
    %352 = vmatprep.subr.mxu0 0.0
    %353 = vmatpush2.msra.mxu0 0.0
    %354 = vmatprep.subr.mxu0 0.0
    %355 = vmatpush2.msra.mxu0 0.0
    %356 = vmatprep.subr.mxu0 0.0
    %357 = vmatpush2.msra.mxu0 0.0
    %358 = vmatprep.mubr.f32.mxu0 0.0
    %359 = vmatmul.mubr.f32.gmra.mxu0 %v292
    %v360 = vpop.f32.mrf.mxu0
    %v361 = vadd.f32 %v289, %v360
    %v362 = vpop.f32.mrf.mxu0
    %363 = vdwg.mxu0
    %v364 = vmax.f32 %v361, 0.0
    %v365 = vld [vmem:[%s1] sm:$0xff]
    %v366 = vld [vmem:[%s1 + $0x8] sm:$0xff]
    %v369 = vcombine.high %v365, %v365
    %v371 = vunpack.c.l.s4 1983009808
    %v372 = vunpack.c.0.s8 %v371
    %v373 = vlaneseq
    %v374 = vshrl.u32 %v373, 7
    %v375 = vsub.s32 %v372, %v374
    %v376 = vrot.slane %v365, %v375
    %v378 = vunpack.c.l.s4 1983009808
    %v379 = vunpack.c.0.s8 %v378
    %v380 = vlaneseq
    %v381 = vshrl.u32 %v380, 7
    %v382 = vsub.s32 %v379, %v381
    %v383 = vrot.slane %v369, %v382
    %v384 = vcombine.high %v376, %v376
    %v385 = vcombine.high %v383, %v383
    %v386 = vcombine.high %v366, %v366
    %v388 = vunpack.c.l.s4 1983009808
    %v389 = vunpack.c.0.s8 %v388
    %v390 = vlaneseq
    %v391 = vshrl.u32 %v390, 7
    %v392 = vsub.s32 %v389, %v391
    %v393 = vrot.slane %v366, %v392
    %v395 = vunpack.c.l.s4 1983009808
    %v396 = vunpack.c.0.s8 %v395
    %v397 = vlaneseq
    %v398 = vshrl.u32 %v397, 7
    %v399 = vsub.s32 %v396, %v398
    %v400 = vrot.slane %v386, %v399
    %v401 = vcombine.high %v393, %v393
    %v402 = vcombine.high %v400, %v400
    %v411 = vpack.c.bf16 %v376, %v376
    %v412 = vpack.c.bf16 %v384, %v384
    %v413 = vpack.c.bf16 %v383, %v383
    %v414 = vpack.c.bf16 %v385, %v385
    %v415 = vpack.c.bf16 %v393, %v393
    %v416 = vpack.c.bf16 %v401, %v401
    %v417 = vpack.c.bf16 %v400, %v400
    %v418 = vpack.c.bf16 %v402, %v402
    %v419 = vld [vmem:[%s5] sm:$0xf]
    %v420 = vld [vmem:[%s5 + $0x4] sm:$0xf]
    %v421 = vld [vmem:[%s5 + $0x8] sm:$0xf]
    %v422 = vld [vmem:[%s5 + $0xc] sm:$0xf]
    %v423 = vld [vmem:[%s5 + $0x10] sm:$0xf]
    %v424 = vld [vmem:[%s5 + $0x14] sm:$0xf]
    %v425 = vld [vmem:[%s5 + $0x18] sm:$0xf]
    %v426 = vld [vmem:[%s5 + $0x1c] sm:$0xf]
    %v427 = vld [vmem:[%s5 + $0x20] sm:$0xf]
    %v428 = vld [vmem:[%s5 + $0x24] sm:$0xf]
    %v429 = vld [vmem:[%s5 + $0x28] sm:$0xf]
    %v430 = vld [vmem:[%s5 + $0x2c] sm:$0xf]
    %v431 = vld [vmem:[%s5 + $0x30] sm:$0xf]
    %v432 = vld [vmem:[%s5 + $0x34] sm:$0xf]
    %v433 = vld [vmem:[%s5 + $0x38] sm:$0xf]
    %v434 = vld [vmem:[%s5 + $0x3c] sm:$0xf]
    %v435 = vld [vmem:[%s5 + $0x40] sm:$0xf]
    %v436 = vld [vmem:[%s5 + $0x44] sm:$0xf]
    %v437 = vld [vmem:[%s5 + $0x48] sm:$0xf]
    %v438 = vld [vmem:[%s5 + $0x4c] sm:$0xf]
    %v439 = vld [vmem:[%s5 + $0x50] sm:$0xf]
    %v440 = vld [vmem:[%s5 + $0x54] sm:$0xf]
    %v441 = vld [vmem:[%s5 + $0x58] sm:$0xf]
    %v442 = vld [vmem:[%s5 + $0x5c] sm:$0xf]
    %v443 = vld [vmem:[%s5 + $0x60] sm:$0xf]
    %v444 = vld [vmem:[%s5 + $0x64] sm:$0xf]
    %v445 = vld [vmem:[%s5 + $0x68] sm:$0xf]
    %v446 = vld [vmem:[%s5 + $0x6c] sm:$0xf]
    %v447 = vld [vmem:[%s5 + $0x70] sm:$0xf]
    %v448 = vld [vmem:[%s5 + $0x74] sm:$0xf]
    %v449 = vld [vmem:[%s5 + $0x78] sm:$0xf]
    %v450 = vld [vmem:[%s5 + $0x7c] sm:$0xf]
    %v451 = vld [vmem:[%s5 + $0x80] sm:$0xf]
    %v452 = vld [vmem:[%s5 + $0x84] sm:$0xf]
    %v453 = vld [vmem:[%s5 + $0x88] sm:$0xf]
    %v454 = vld [vmem:[%s5 + $0x8c] sm:$0xf]
    %v455 = vld [vmem:[%s5 + $0x90] sm:$0xf]
    %v456 = vld [vmem:[%s5 + $0x94] sm:$0xf]
    %v457 = vld [vmem:[%s5 + $0x98] sm:$0xf]
    %v458 = vld [vmem:[%s5 + $0x9c] sm:$0xf]
    %v459 = vld [vmem:[%s5 + $0xa0] sm:$0xf]
    %v460 = vld [vmem:[%s5 + $0xa4] sm:$0xf]
    %v461 = vld [vmem:[%s5 + $0xa8] sm:$0xf]
    %v462 = vld [vmem:[%s5 + $0xac] sm:$0xf]
    %v463 = vld [vmem:[%s5 + $0xb0] sm:$0xf]
    %v464 = vld [vmem:[%s5 + $0xb4] sm:$0xf]
    %v465 = vld [vmem:[%s5 + $0xb8] sm:$0xf]
    %v466 = vld [vmem:[%s5 + $0xbc] sm:$0xf]
    %v467 = vld [vmem:[%s5 + $0xc0] sm:$0xf]
    %v468 = vld [vmem:[%s5 + $0xc4] sm:$0xf]
    %v469 = vld [vmem:[%s5 + $0xc8] sm:$0xf]
    %v470 = vld [vmem:[%s5 + $0xcc] sm:$0xf]
    %v471 = vld [vmem:[%s5 + $0xd0] sm:$0xf]
    %v472 = vld [vmem:[%s5 + $0xd4] sm:$0xf]
    %v473 = vld [vmem:[%s5 + $0xd8] sm:$0xf]
    %v474 = vld [vmem:[%s5 + $0xdc] sm:$0xf]
    %v475 = vld [vmem:[%s5 + $0xe0] sm:$0xf]
    %v476 = vld [vmem:[%s5 + $0xe4] sm:$0xf]
    %v477 = vld [vmem:[%s5 + $0xe8] sm:$0xf]
    %v478 = vld [vmem:[%s5 + $0xec] sm:$0xf]
    %v479 = vld [vmem:[%s5 + $0xf0] sm:$0xf]
    %v480 = vld [vmem:[%s5 + $0xf4] sm:$0xf]
    %v481 = vld [vmem:[%s5 + $0xf8] sm:$0xf]
    %v482 = vld [vmem:[%s5 + $0xfc] sm:$0xf]
    %v483 = vld [vmem:[%s5 + $0x100] sm:$0xf]
    %v484 = vld [vmem:[%s5 + $0x104] sm:$0xf]
    %v485 = vld [vmem:[%s5 + $0x108] sm:$0xf]
    %v486 = vld [vmem:[%s5 + $0x10c] sm:$0xf]
    %v487 = vld [vmem:[%s5 + $0x110] sm:$0xf]
    %v488 = vld [vmem:[%s5 + $0x114] sm:$0xf]
    %v489 = vld [vmem:[%s5 + $0x118] sm:$0xf]
    %v490 = vld [vmem:[%s5 + $0x11c] sm:$0xf]
    %v491 = vld [vmem:[%s5 + $0x120] sm:$0xf]
    %v492 = vld [vmem:[%s5 + $0x124] sm:$0xf]
    %v493 = vld [vmem:[%s5 + $0x128] sm:$0xf]
    %v494 = vld [vmem:[%s5 + $0x12c] sm:$0xf]
    %v495 = vld [vmem:[%s5 + $0x130] sm:$0xf]
    %v496 = vld [vmem:[%s5 + $0x134] sm:$0xf]
    %v497 = vld [vmem:[%s5 + $0x138] sm:$0xf]
    %v498 = vld [vmem:[%s5 + $0x13c] sm:$0xf]
    %v499 = vld [vmem:[%s5 + $0x140] sm:$0xf]
    %v500 = vld [vmem:[%s5 + $0x144] sm:$0xf]
    %v501 = vld [vmem:[%s5 + $0x148] sm:$0xf]
    %v502 = vld [vmem:[%s5 + $0x14c] sm:$0xf]
    %v503 = vld [vmem:[%s5 + $0x150] sm:$0xf]
    %v504 = vld [vmem:[%s5 + $0x154] sm:$0xf]
    %v505 = vld [vmem:[%s5 + $0x158] sm:$0xf]
    %v506 = vld [vmem:[%s5 + $0x15c] sm:$0xf]
    %v507 = vld [vmem:[%s5 + $0x160] sm:$0xf]
    %v508 = vld [vmem:[%s5 + $0x164] sm:$0xf]
    %v509 = vld [vmem:[%s5 + $0x168] sm:$0xf]
    %v510 = vld [vmem:[%s5 + $0x16c] sm:$0xf]
    %v511 = vld [vmem:[%s5 + $0x170] sm:$0xf]
    %v512 = vld [vmem:[%s5 + $0x174] sm:$0xf]
    %v513 = vld [vmem:[%s5 + $0x178] sm:$0xf]
    %v514 = vld [vmem:[%s5 + $0x17c] sm:$0xf]
    %v515 = vld [vmem:[%s5 + $0x180] sm:$0xf]
    %v516 = vld [vmem:[%s5 + $0x184] sm:$0xf]
    %v517 = vld [vmem:[%s5 + $0x188] sm:$0xf]
    %v518 = vld [vmem:[%s5 + $0x18c] sm:$0xf]
    %v519 = vld [vmem:[%s5 + $0x190] sm:$0xf]
    %v520 = vld [vmem:[%s5 + $0x194] sm:$0xf]
    %v521 = vld [vmem:[%s5 + $0x198] sm:$0xf]
    %v522 = vld [vmem:[%s5 + $0x19c] sm:$0xf]
    %v523 = vld [vmem:[%s5 + $0x1a0] sm:$0xf]
    %v524 = vld [vmem:[%s5 + $0x1a4] sm:$0xf]
    %v525 = vld [vmem:[%s5 + $0x1a8] sm:$0xf]
    %v526 = vld [vmem:[%s5 + $0x1ac] sm:$0xf]
    %v527 = vld [vmem:[%s5 + $0x1b0] sm:$0xf]
    %v528 = vld [vmem:[%s5 + $0x1b4] sm:$0xf]
    %v529 = vld [vmem:[%s5 + $0x1b8] sm:$0xf]
    %v530 = vld [vmem:[%s5 + $0x1bc] sm:$0xf]
    %v531 = vld [vmem:[%s5 + $0x1c0] sm:$0xf]
    %v532 = vld [vmem:[%s5 + $0x1c4] sm:$0xf]
    %v533 = vld [vmem:[%s5 + $0x1c8] sm:$0xf]
    %v534 = vld [vmem:[%s5 + $0x1cc] sm:$0xf]
    %v535 = vld [vmem:[%s5 + $0x1d0] sm:$0xf]
    %v536 = vld [vmem:[%s5 + $0x1d4] sm:$0xf]
    %v537 = vld [vmem:[%s5 + $0x1d8] sm:$0xf]
    %v538 = vld [vmem:[%s5 + $0x1dc] sm:$0xf]
    %v539 = vld [vmem:[%s5 + $0x1e0] sm:$0xf]
    %v540 = vld [vmem:[%s5 + $0x1e4] sm:$0xf]
    %v541 = vld [vmem:[%s5 + $0x1e8] sm:$0xf]
    %v542 = vld [vmem:[%s5 + $0x1ec] sm:$0xf]
    %v543 = vld [vmem:[%s5 + $0x1f0] sm:$0xf]
    %v544 = vld [vmem:[%s5 + $0x1f4] sm:$0xf]
    %v545 = vld [vmem:[%s5 + $0x1f8] sm:$0xf]
    %v546 = vld [vmem:[%s5 + $0x1fc] sm:$0xf]
    %v548 = vsel %vm290, %v364, 0
    %550 = vmatprep.subr.mxu0 0.0
    %551 = vmatpush1.msra.mxu0 0.0
    %552 = vmatprep.subr.mxu0 0.0
    %553 = vmatpush1.msra.mxu0 0.0
    %554 = vmatprep.subr.mxu0 0.0
    %555 = vmatpush1.msra.mxu0 0.0
    %556 = vmatprep.subr.mxu0 0.0
    %557 = vmatpush1.msra.mxu0 0.0
    %558 = vmatprep.subr.mxu0 0.0
    %559 = vmatpush1.msra.mxu0 0.0
    %560 = vmatprep.subr.mxu0 0.0
    %561 = vmatpush1.msra.mxu0 0.0
    %562 = vmatprep.subr.mxu0 0.0
    %563 = vmatpush1.msra.mxu0 0.0
    %564 = vmatprep.subr.mxu0 0.0
    %565 = vmatpush1.msra.mxu0 0.0
    %566 = vmatprep.subr.mxu0 0.0
    %567 = vmatpush1.msra.mxu0 0.0
    %568 = vmatprep.subr.mxu0 0.0
    %569 = vmatpush1.msra.mxu0 0.0
    %570 = vmatprep.subr.mxu0 0.0
    %571 = vmatpush1.msra.mxu0 0.0
    %572 = vmatprep.subr.mxu0 0.0
    %573 = vmatpush1.msra.mxu0 0.0
    %574 = vmatprep.subr.mxu0 0.0
    %575 = vmatpush1.msra.mxu0 %v280
    %576 = vmatprep.subr.mxu0 0.0
    %577 = vmatpush1.msra.mxu0 %v279
    %578 = vmatprep.subr.mxu0 0.0
    %579 = vmatpush1.msra.mxu0 %v278
    %580 = vmatprep.subr.mxu0 0.0
    %581 = vmatpush1.msra.mxu0 %v277
    %582 = vmatprep.subr.mxu0 0.0
    %583 = vmatpush2.msra.mxu0 0.0
    %584 = vmatprep.subr.mxu0 0.0
    %585 = vmatpush2.msra.mxu0 0.0
    %586 = vmatprep.subr.mxu0 0.0
    %587 = vmatpush2.msra.mxu0 0.0
    %588 = vmatprep.subr.mxu0 0.0
    %589 = vmatpush2.msra.mxu0 0.0
    %590 = vmatprep.subr.mxu0 0.0
    %591 = vmatpush2.msra.mxu0 0.0
    %592 = vmatprep.subr.mxu0 0.0
    %593 = vmatpush2.msra.mxu0 0.0
    %594 = vmatprep.subr.mxu0 0.0
    %595 = vmatpush2.msra.mxu0 0.0
    %596 = vmatprep.subr.mxu0 0.0
    %597 = vmatpush2.msra.mxu0 0.0
    %598 = vmatprep.subr.mxu0 0.0
    %599 = vmatpush2.msra.mxu0 0.0
    %600 = vmatprep.subr.mxu0 0.0
    %601 = vmatpush2.msra.mxu0 0.0
    %602 = vmatprep.subr.mxu0 0.0
    %603 = vmatpush2.msra.mxu0 0.0
    %604 = vmatprep.subr.mxu0 0.0
    %605 = vmatpush2.msra.mxu0 0.0
    %606 = vmatprep.subr.mxu0 0.0
    %607 = vmatpush2.msra.mxu0 0.0
    %608 = vmatprep.subr.mxu0 0.0
    %609 = vmatpush2.msra.mxu0 0.0
    %610 = vmatprep.subr.mxu0 0.0
    %611 = vmatpush2.msra.mxu0 0.0
    %612 = vmatprep.subr.mxu0 0.0
    %613 = vmatpush2.msra.mxu0 0.0
    %614 = vmatprep.mubr.f32.mxu0 0.0
    %615 = vmatmul.mubr.f32.gmra.mxu0 %v548
    %v616 = vpop.f32.mrf.mxu0
    %v617 = vadd.f32 0.0, %v616
    %v618 = vpop.f32.mrf.mxu0
    %619 = vdwg.mxu0
    %v748 = vunpack.c.l.b16 %v419
    %v749 = vunpack.c.l.b16 %v420
    %v750 = vunpack.c.l.b16 %v421
    %v751 = vunpack.c.l.b16 %v422
    %v752 = vunpack.c.l.b16 %v423
    %v753 = vunpack.c.l.b16 %v424
    %v754 = vunpack.c.l.b16 %v425
    %v755 = vunpack.c.l.b16 %v426
    %v756 = vunpack.c.l.b16 %v427
    %v757 = vunpack.c.l.b16 %v428
    %v758 = vunpack.c.l.b16 %v429
    %v759 = vunpack.c.l.b16 %v430
    %v760 = vunpack.c.l.b16 %v431
    %v761 = vunpack.c.l.b16 %v432
    %v762 = vunpack.c.l.b16 %v433
    %v763 = vunpack.c.l.b16 %v434
    %v764 = vunpack.c.l.b16 %v435
    %v765 = vunpack.c.l.b16 %v436
    %v766 = vunpack.c.l.b16 %v437
    %v767 = vunpack.c.l.b16 %v438
    %v768 = vunpack.c.l.b16 %v439
    %v769 = vunpack.c.l.b16 %v440
    %v770 = vunpack.c.l.b16 %v441
    %v771 = vunpack.c.l.b16 %v442
    %v772 = vunpack.c.l.b16 %v443
    %v773 = vunpack.c.l.b16 %v444
    %v774 = vunpack.c.l.b16 %v445
    %v775 = vunpack.c.l.b16 %v446
    %v776 = vunpack.c.l.b16 %v447
    %v777 = vunpack.c.l.b16 %v448
    %v778 = vunpack.c.l.b16 %v449
    %v779 = vunpack.c.l.b16 %v450
    %v780 = vunpack.c.l.b16 %v451
    %v781 = vunpack.c.l.b16 %v452
    %v782 = vunpack.c.l.b16 %v453
    %v783 = vunpack.c.l.b16 %v454
    %v784 = vunpack.c.l.b16 %v455
    %v785 = vunpack.c.l.b16 %v456
    %v786 = vunpack.c.l.b16 %v457
    %v787 = vunpack.c.l.b16 %v458
    %v788 = vunpack.c.l.b16 %v459
    %v789 = vunpack.c.l.b16 %v460
    %v790 = vunpack.c.l.b16 %v461
    %v791 = vunpack.c.l.b16 %v462
    %v792 = vunpack.c.l.b16 %v463
    %v793 = vunpack.c.l.b16 %v464
    %v794 = vunpack.c.l.b16 %v465
    %v795 = vunpack.c.l.b16 %v466
    %v796 = vunpack.c.l.b16 %v467
    %v797 = vunpack.c.l.b16 %v468
    %v798 = vunpack.c.l.b16 %v469
    %v799 = vunpack.c.l.b16 %v470
    %v800 = vunpack.c.l.b16 %v471
    %v801 = vunpack.c.l.b16 %v472
    %v802 = vunpack.c.l.b16 %v473
    %v803 = vunpack.c.l.b16 %v474
    %v804 = vunpack.c.l.b16 %v475
    %v805 = vunpack.c.l.b16 %v476
    %v806 = vunpack.c.l.b16 %v477
    %v807 = vunpack.c.l.b16 %v478
    %v808 = vunpack.c.l.b16 %v479
    %v809 = vunpack.c.l.b16 %v480
    %v810 = vunpack.c.l.b16 %v481
    %v811 = vunpack.c.l.b16 %v482
    %v812 = vunpack.c.l.b16 %v483
    %v813 = vunpack.c.l.b16 %v484
    %v814 = vunpack.c.l.b16 %v485
    %v815 = vunpack.c.l.b16 %v486
    %v816 = vunpack.c.l.b16 %v487
    %v817 = vunpack.c.l.b16 %v488
    %v818 = vunpack.c.l.b16 %v489
    %v819 = vunpack.c.l.b16 %v490
    %v820 = vunpack.c.l.b16 %v491
    %v821 = vunpack.c.l.b16 %v492
    %v822 = vunpack.c.l.b16 %v493
    %v823 = vunpack.c.l.b16 %v494
    %v824 = vunpack.c.l.b16 %v495
    %v825 = vunpack.c.l.b16 %v496
    %v826 = vunpack.c.l.b16 %v497
    %v827 = vunpack.c.l.b16 %v498
    %v828 = vunpack.c.l.b16 %v499
    %v829 = vunpack.c.l.b16 %v500
    %v830 = vunpack.c.l.b16 %v501
    %v831 = vunpack.c.l.b16 %v502
    %v832 = vunpack.c.l.b16 %v503
    %v833 = vunpack.c.l.b16 %v504
    %v834 = vunpack.c.l.b16 %v505
    %v835 = vunpack.c.l.b16 %v506
    %v836 = vunpack.c.l.b16 %v507
    %v837 = vunpack.c.l.b16 %v508
    %v838 = vunpack.c.l.b16 %v509
    %v839 = vunpack.c.l.b16 %v510
    %v840 = vunpack.c.l.b16 %v511
    %v841 = vunpack.c.l.b16 %v512
    %v842 = vunpack.c.l.b16 %v513
    %v843 = vunpack.c.l.b16 %v514
    %v844 = vunpack.c.l.b16 %v515
    %v845 = vunpack.c.l.b16 %v516
    %v846 = vunpack.c.l.b16 %v517
    %v847 = vunpack.c.l.b16 %v518
    %v848 = vunpack.c.l.b16 %v519
    %v849 = vunpack.c.l.b16 %v520
    %v850 = vunpack.c.l.b16 %v521
    %v851 = vunpack.c.l.b16 %v522
    %v852 = vunpack.c.l.b16 %v523
    %v853 = vunpack.c.l.b16 %v524
    %v854 = vunpack.c.l.b16 %v525
    %v855 = vunpack.c.l.b16 %v526
    %v856 = vunpack.c.l.b16 %v527
    %v857 = vunpack.c.l.b16 %v528
    %v858 = vunpack.c.l.b16 %v529
    %v859 = vunpack.c.l.b16 %v530
    %v860 = vunpack.c.l.b16 %v531
    %v861 = vunpack.c.l.b16 %v532
    %v862 = vunpack.c.l.b16 %v533
    %v863 = vunpack.c.l.b16 %v534
    %v864 = vunpack.c.l.b16 %v535
    %v865 = vunpack.c.l.b16 %v536
    %v866 = vunpack.c.l.b16 %v537
    %v867 = vunpack.c.l.b16 %v538
    %v868 = vunpack.c.l.b16 %v539
    %v869 = vunpack.c.l.b16 %v540
    %v870 = vunpack.c.l.b16 %v541
    %v871 = vunpack.c.l.b16 %v542
    %v872 = vunpack.c.l.b16 %v543
    %v873 = vunpack.c.l.b16 %v544
    %v874 = vunpack.c.l.b16 %v545
    %v875 = vunpack.c.l.b16 %v546
    %v876 = vpack.c.b16 %v749, %v748
    %v877 = vpack.c.b16 %v751, %v750
    %v878 = vpack.c.b16 %v753, %v752
    %v879 = vpack.c.b16 %v755, %v754
    %v880 = vpack.c.b16 %v757, %v756
    %v881 = vpack.c.b16 %v759, %v758
    %v882 = vpack.c.b16 %v761, %v760
    %v883 = vpack.c.b16 %v763, %v762
    %v884 = vpack.c.b16 %v765, %v764
    %v885 = vpack.c.b16 %v767, %v766
    %v886 = vpack.c.b16 %v769, %v768
    %v887 = vpack.c.b16 %v771, %v770
    %v888 = vpack.c.b16 %v773, %v772
    %v889 = vpack.c.b16 %v775, %v774
    %v890 = vpack.c.b16 %v777, %v776
    %v891 = vpack.c.b16 %v779, %v778
    %v892 = vpack.c.b16 %v781, %v780
    %v893 = vpack.c.b16 %v783, %v782
    %v894 = vpack.c.b16 %v785, %v784
    %v895 = vpack.c.b16 %v787, %v786
    %v896 = vpack.c.b16 %v789, %v788
    %v897 = vpack.c.b16 %v791, %v790
    %v898 = vpack.c.b16 %v793, %v792
    %v899 = vpack.c.b16 %v795, %v794
    %v900 = vpack.c.b16 %v797, %v796
    %v901 = vpack.c.b16 %v799, %v798
    %v902 = vpack.c.b16 %v801, %v800
    %v903 = vpack.c.b16 %v803, %v802
    %v904 = vpack.c.b16 %v805, %v804
    %v905 = vpack.c.b16 %v807, %v806
    %v906 = vpack.c.b16 %v809, %v808
    %v907 = vpack.c.b16 %v811, %v810
    %v908 = vpack.c.b16 %v813, %v812
    %v909 = vpack.c.b16 %v815, %v814
    %v910 = vpack.c.b16 %v817, %v816
    %v911 = vpack.c.b16 %v819, %v818
    %v912 = vpack.c.b16 %v821, %v820
    %v913 = vpack.c.b16 %v823, %v822
    %v914 = vpack.c.b16 %v825, %v824
    %v915 = vpack.c.b16 %v827, %v826
    %v916 = vpack.c.b16 %v829, %v828
    %v917 = vpack.c.b16 %v831, %v830
    %v918 = vpack.c.b16 %v833, %v832
    %v919 = vpack.c.b16 %v835, %v834
    %v920 = vpack.c.b16 %v837, %v836
    %v921 = vpack.c.b16 %v839, %v838
    %v922 = vpack.c.b16 %v841, %v840
    %v923 = vpack.c.b16 %v843, %v842
    %v924 = vpack.c.b16 %v845, %v844
    %v925 = vpack.c.b16 %v847, %v846
    %v926 = vpack.c.b16 %v849, %v848
    %v927 = vpack.c.b16 %v851, %v850
    %v928 = vpack.c.b16 %v853, %v852
    %v929 = vpack.c.b16 %v855, %v854
    %v930 = vpack.c.b16 %v857, %v856
    %v931 = vpack.c.b16 %v859, %v858
    %v932 = vpack.c.b16 %v861, %v860
    %v933 = vpack.c.b16 %v863, %v862
    %v934 = vpack.c.b16 %v865, %v864
    %v935 = vpack.c.b16 %v867, %v866
    %v936 = vpack.c.b16 %v869, %v868
    %v937 = vpack.c.b16 %v871, %v870
    %v938 = vpack.c.b16 %v873, %v872
    %v939 = vpack.c.b16 %v875, %v874
    %1004 = vmatprep.subr.bf16.mxu0 0
    %1005 = vmatpush1.bf16.msra.mxu0 %v883
    %1006 = vmatprep.subr.bf16.mxu0 0
    %1007 = vmatpush1.bf16.msra.mxu0 %v882
    %1008 = vmatprep.subr.bf16.mxu0 0
    %1009 = vmatpush1.bf16.msra.mxu0 %v881
    %1010 = vmatprep.subr.bf16.mxu0 0
    %1011 = vmatpush1.bf16.msra.mxu0 %v880
    %1012 = vmatprep.subr.bf16.mxu0 0
    %1013 = vmatpush1.bf16.msra.mxu0 %v879
    %1014 = vmatprep.subr.bf16.mxu0 0
    %1015 = vmatpush1.bf16.msra.mxu0 %v878
    %1016 = vmatprep.subr.bf16.mxu0 0
    %1017 = vmatpush1.bf16.msra.mxu0 %v877
    %1018 = vmatprep.subr.bf16.mxu0 0
    %1019 = vmatpush1.bf16.msra.mxu0 %v876
    %1020 = vmatprep.subr.bf16.mxu0 0
    %1021 = vmatpush2.bf16.msra.mxu0 %v891
    %1022 = vmatprep.subr.bf16.mxu0 0
    %1023 = vmatpush2.bf16.msra.mxu0 %v890
    %1024 = vmatprep.subr.bf16.mxu0 0
    %1025 = vmatpush2.bf16.msra.mxu0 %v889
    %1026 = vmatprep.subr.bf16.mxu0 0
    %1027 = vmatpush2.bf16.msra.mxu0 %v888
    %1028 = vmatprep.subr.bf16.mxu0 0
    %1029 = vmatpush2.bf16.msra.mxu0 %v887
    %1030 = vmatprep.subr.bf16.mxu0 0
    %1031 = vmatpush2.bf16.msra.mxu0 %v886
    %1032 = vmatprep.subr.bf16.mxu0 0
    %1033 = vmatpush2.bf16.msra.mxu0 %v885
    %1034 = vmatprep.subr.bf16.mxu0 0
    %1035 = vmatpush2.bf16.msra.mxu0 %v884
    %1036 = vmatprep.mubr.bf16.mxu0 %v412
    %1037 = vmatmul.mubr.bf16.gmra.mxu0 %v411
    %v1038 = vpop.f32.mrf.mxu0
    %v1039 = vadd.f32 %v617, %v1038
    %v1040 = vpop.f32.mrf.mxu0
    %v1041 = vpop.f32.mrf.mxu0
    %v1042 = vpop.f32.mrf.mxu0
    %1043 = vdwg.mxu0
    %1044 = vmatprep.subr.bf16.mxu0 0
    %1045 = vmatpush1.bf16.msra.mxu0 %v899
    %1046 = vmatprep.subr.bf16.mxu0 0
    %1047 = vmatpush1.bf16.msra.mxu0 %v898
    %1048 = vmatprep.subr.bf16.mxu0 0
    %1049 = vmatpush1.bf16.msra.mxu0 %v897
    %1050 = vmatprep.subr.bf16.mxu0 0
    %1051 = vmatpush1.bf16.msra.mxu0 %v896
    %1052 = vmatprep.subr.bf16.mxu0 0
    %1053 = vmatpush1.bf16.msra.mxu0 %v895
    %1054 = vmatprep.subr.bf16.mxu0 0
    %1055 = vmatpush1.bf16.msra.mxu0 %v894
    %1056 = vmatprep.subr.bf16.mxu0 0
    %1057 = vmatpush1.bf16.msra.mxu0 %v893
    %1058 = vmatprep.subr.bf16.mxu0 0
    %1059 = vmatpush1.bf16.msra.mxu0 %v892
    %1060 = vmatprep.subr.bf16.mxu0 0
    %1061 = vmatpush2.bf16.msra.mxu0 %v907
    %1062 = vmatprep.subr.bf16.mxu0 0
    %1063 = vmatpush2.bf16.msra.mxu0 %v906
    %1064 = vmatprep.subr.bf16.mxu0 0
    %1065 = vmatpush2.bf16.msra.mxu0 %v905
    %1066 = vmatprep.subr.bf16.mxu0 0
    %1067 = vmatpush2.bf16.msra.mxu0 %v904
    %1068 = vmatprep.subr.bf16.mxu0 0
    %1069 = vmatpush2.bf16.msra.mxu0 %v903
    %1070 = vmatprep.subr.bf16.mxu0 0
    %1071 = vmatpush2.bf16.msra.mxu0 %v902
    %1072 = vmatprep.subr.bf16.mxu0 0
    %1073 = vmatpush2.bf16.msra.mxu0 %v901
    %1074 = vmatprep.subr.bf16.mxu0 0
    %1075 = vmatpush2.bf16.msra.mxu0 %v900
    %1076 = vmatprep.mubr.bf16.mxu0 %v414
    %1077 = vmatmul.mubr.bf16.gmra.mxu0 %v413
    %v1078 = vpop.f32.mrf.mxu0
    %v1079 = vadd.f32 %v1039, %v1078
    %v1080 = vpop.f32.mrf.mxu0
    %v1081 = vpop.f32.mrf.mxu0
    %v1082 = vpop.f32.mrf.mxu0
    %1083 = vdwg.mxu0
    %1084 = vmatprep.subr.bf16.mxu0 0
    %1085 = vmatpush1.bf16.msra.mxu0 %v915
    %1086 = vmatprep.subr.bf16.mxu0 0
    %1087 = vmatpush1.bf16.msra.mxu0 %v914
    %1088 = vmatprep.subr.bf16.mxu0 0
    %1089 = vmatpush1.bf16.msra.mxu0 %v913
    %1090 = vmatprep.subr.bf16.mxu0 0
    %1091 = vmatpush1.bf16.msra.mxu0 %v912
    %1092 = vmatprep.subr.bf16.mxu0 0
    %1093 = vmatpush1.bf16.msra.mxu0 %v911
    %1094 = vmatprep.subr.bf16.mxu0 0
    %1095 = vmatpush1.bf16.msra.mxu0 %v910
    %1096 = vmatprep.subr.bf16.mxu0 0
    %1097 = vmatpush1.bf16.msra.mxu0 %v909
    %1098 = vmatprep.subr.bf16.mxu0 0
    %1099 = vmatpush1.bf16.msra.mxu0 %v908
    %1100 = vmatprep.subr.bf16.mxu0 0
    %1101 = vmatpush2.bf16.msra.mxu0 %v923
    %1102 = vmatprep.subr.bf16.mxu0 0
    %1103 = vmatpush2.bf16.msra.mxu0 %v922
    %1104 = vmatprep.subr.bf16.mxu0 0
    %1105 = vmatpush2.bf16.msra.mxu0 %v921
    %1106 = vmatprep.subr.bf16.mxu0 0
    %1107 = vmatpush2.bf16.msra.mxu0 %v920
    %1108 = vmatprep.subr.bf16.mxu0 0
    %1109 = vmatpush2.bf16.msra.mxu0 %v919
    %1110 = vmatprep.subr.bf16.mxu0 0
    %1111 = vmatpush2.bf16.msra.mxu0 %v918
    %1112 = vmatprep.subr.bf16.mxu0 0
    %1113 = vmatpush2.bf16.msra.mxu0 %v917
    %1114 = vmatprep.subr.bf16.mxu0 0
    %1115 = vmatpush2.bf16.msra.mxu0 %v916
    %1116 = vmatprep.mubr.bf16.mxu0 %v416
    %1117 = vmatmul.mubr.bf16.gmra.mxu0 %v415
    %v1118 = vpop.f32.mrf.mxu0
    %v1119 = vadd.f32 %v1079, %v1118
    %v1120 = vpop.f32.mrf.mxu0
    %v1121 = vpop.f32.mrf.mxu0
    %v1122 = vpop.f32.mrf.mxu0
    %1123 = vdwg.mxu0
    %1124 = vmatprep.subr.bf16.mxu0 0
    %1125 = vmatpush1.bf16.msra.mxu0 %v931
    %1126 = vmatprep.subr.bf16.mxu0 0
    %1127 = vmatpush1.bf16.msra.mxu0 %v930
    %1128 = vmatprep.subr.bf16.mxu0 0
    %1129 = vmatpush1.bf16.msra.mxu0 %v929
    %1130 = vmatprep.subr.bf16.mxu0 0
    %1131 = vmatpush1.bf16.msra.mxu0 %v928
    %1132 = vmatprep.subr.bf16.mxu0 0
    %1133 = vmatpush1.bf16.msra.mxu0 %v927
    %1134 = vmatprep.subr.bf16.mxu0 0
    %1135 = vmatpush1.bf16.msra.mxu0 %v926
    %1136 = vmatprep.subr.bf16.mxu0 0
    %1137 = vmatpush1.bf16.msra.mxu0 %v925
    %1138 = vmatprep.subr.bf16.mxu0 0
    %1139 = vmatpush1.bf16.msra.mxu0 %v924
    %1140 = vmatprep.subr.bf16.mxu0 0
    %1141 = vmatpush2.bf16.msra.mxu0 %v939
    %1142 = vmatprep.subr.bf16.mxu0 0
    %1143 = vmatpush2.bf16.msra.mxu0 %v938
    %1144 = vmatprep.subr.bf16.mxu0 0
    %1145 = vmatpush2.bf16.msra.mxu0 %v937
    %1146 = vmatprep.subr.bf16.mxu0 0
    %1147 = vmatpush2.bf16.msra.mxu0 %v936
    %1148 = vmatprep.subr.bf16.mxu0 0
    %1149 = vmatpush2.bf16.msra.mxu0 %v935
    %1150 = vmatprep.subr.bf16.mxu0 0
    %1151 = vmatpush2.bf16.msra.mxu0 %v934
    %1152 = vmatprep.subr.bf16.mxu0 0
    %1153 = vmatpush2.bf16.msra.mxu0 %v933
    %1154 = vmatprep.subr.bf16.mxu0 0
    %1155 = vmatpush2.bf16.msra.mxu0 %v932
    %1156 = vmatprep.mubr.bf16.mxu0 %v418
    %1157 = vmatmul.mubr.bf16.gmra.mxu0 %v417
    %v1158 = vpop.f32.mrf.mxu0
    %v1159 = vadd.f32 %v1119, %v1158
    %v1160 = vpop.f32.mrf.mxu0
    %v1161 = vpop.f32.mrf.mxu0
    %v1162 = vpop.f32.mrf.mxu0
    %1163 = vdwg.mxu0
    %v1164 = vlaneseq
    %v1165 = vshrl.u32 %v1164, 7
    %v1166 = vsub.s32 1, %v1165
    %v1167 = vrot.slane %v285, %v1166
    %v1168 = vadd.f32 %v1159, %v1167
    %vm1169 = vcmp.ge.f32.partialorder %v1168, 0.0
    %v1170 = vmul.f32 %v1168, 0.01
    %v1171 = vsel %vm1169, %v1168, %v1170
    %vm1172 = vcmask 254976
    %v1173 = vsel %vm1172, %v1171, 0.0
    %v1174 = vrot.slane %v1173, 4
    %v1175 = vadd.f32 %v1173, %v1174
    %v1176 = vrot.slane %v1175, 2
    %v1177 = vadd.f32 %v1175, %v1176
    %v1178 = vrot.slane %v1177, 1
    %v1179 = vadd.f32 %v1177, %v1178
    %v1180 = vrcp.pop 2.0
    %v1181 = vmul.f32 %v1179, %v1180
    %v1182 = vsub.f32 %v1171, %v1181
    %v1183 = vmul.f32 %v1182, %v1182
    %v1184 = vsel %vm1172, %v1183, 0.0
    %v1185 = vrot.slane %v1184, 4
    %v1186 = vadd.f32 %v1184, %v1185
    %v1187 = vrot.slane %v1186, 2
    %v1188 = vadd.f32 %v1186, %v1187
    %v1189 = vrot.slane %v1188, 1
    %v1190 = vadd.f32 %v1188, %v1189
    %v1191 = vmul.f32 %v1190, %v1180
    %v1192 = vadd.f32 %v1191, 1e-05
    %v1193 = vrsqrt.pop %v1192
    %v1194 = vmul.f32 %v1182, %v1193
    %v1195 = vlaneseq
    %v1196 = vshrl.u32 %v1195, 7
    %v1197 = vsub.s32 2, %v1196
    %v1198 = vrot.slane %v285, %v1197
    %v1200 = vsel %vm290, %v1194, 0
    %1202 = vmatprep.subr.mxu0 0.0
    %1203 = vmatpush1.msra.mxu0 0.0
    %1204 = vmatprep.subr.mxu0 0.0
    %1205 = vmatpush1.msra.mxu0 0.0
    %1206 = vmatprep.subr.mxu0 0.0
    %1207 = vmatpush1.msra.mxu0 0.0
    %1208 = vmatprep.subr.mxu0 0.0
    %1209 = vmatpush1.msra.mxu0 0.0
    %1210 = vmatprep.subr.mxu0 0.0
    %1211 = vmatpush1.msra.mxu0 0.0
    %1212 = vmatprep.subr.mxu0 0.0
    %1213 = vmatpush1.msra.mxu0 0.0
    %1214 = vmatprep.subr.mxu0 0.0
    %1215 = vmatpush1.msra.mxu0 0.0
    %1216 = vmatprep.subr.mxu0 0.0
    %1217 = vmatpush1.msra.mxu0 0.0
    %1218 = vmatprep.subr.mxu0 0.0
    %1219 = vmatpush1.msra.mxu0 0.0
    %1220 = vmatprep.subr.mxu0 0.0
    %1221 = vmatpush1.msra.mxu0 0.0
    %1222 = vmatprep.subr.mxu0 0.0
    %1223 = vmatpush1.msra.mxu0 0.0
    %1224 = vmatprep.subr.mxu0 0.0
    %1225 = vmatpush1.msra.mxu0 0.0
    %1226 = vmatprep.subr.mxu0 0.0
    %1227 = vmatpush1.msra.mxu0 %v284
    %1228 = vmatprep.subr.mxu0 0.0
    %1229 = vmatpush1.msra.mxu0 %v283
    %1230 = vmatprep.subr.mxu0 0.0
    %1231 = vmatpush1.msra.mxu0 %v282
    %1232 = vmatprep.subr.mxu0 0.0
    %1233 = vmatpush1.msra.mxu0 %v281
    %1234 = vmatprep.subr.mxu0 0.0
    %1235 = vmatpush2.msra.mxu0 0.0
    %1236 = vmatprep.subr.mxu0 0.0
    %1237 = vmatpush2.msra.mxu0 0.0
    %1238 = vmatprep.subr.mxu0 0.0
    %1239 = vmatpush2.msra.mxu0 0.0
    %1240 = vmatprep.subr.mxu0 0.0
    %1241 = vmatpush2.msra.mxu0 0.0
    %1242 = vmatprep.subr.mxu0 0.0
    %1243 = vmatpush2.msra.mxu0 0.0
    %1244 = vmatprep.subr.mxu0 0.0
    %1245 = vmatpush2.msra.mxu0 0.0
    %1246 = vmatprep.subr.mxu0 0.0
    %1247 = vmatpush2.msra.mxu0 0.0
    %1248 = vmatprep.subr.mxu0 0.0
    %1249 = vmatpush2.msra.mxu0 0.0
    %1250 = vmatprep.subr.mxu0 0.0
    %1251 = vmatpush2.msra.mxu0 0.0
    %1252 = vmatprep.subr.mxu0 0.0
    %1253 = vmatpush2.msra.mxu0 0.0
    %1254 = vmatprep.subr.mxu0 0.0
    %1255 = vmatpush2.msra.mxu0 0.0
    %1256 = vmatprep.subr.mxu0 0.0
    %1257 = vmatpush2.msra.mxu0 0.0
    %1258 = vmatprep.subr.mxu0 0.0
    %1259 = vmatpush2.msra.mxu0 0.0
    %1260 = vmatprep.subr.mxu0 0.0
    %1261 = vmatpush2.msra.mxu0 0.0
    %1262 = vmatprep.subr.mxu0 0.0
    %1263 = vmatpush2.msra.mxu0 0.0
    %1264 = vmatprep.subr.mxu0 0.0
    %1265 = vmatpush2.msra.mxu0 0.0
    %1266 = vmatprep.mubr.f32.mxu0 0.0
    %1267 = vmatmul.mubr.f32.gmra.mxu0 %v1200
    %v1268 = vpop.f32.mrf.mxu0
    %v1269 = vadd.f32 %v1198, %v1268
    %v1270 = vpop.f32.mrf.mxu0
    %1271 = vdwg.mxu0
    %vm1272 = vcmp.ge.f32.partialorder %v1269, 0.0
    %v1273 = vmul.f32 %v1269, 0.01
    %v1274 = vsel %vm1272, %v1269, %v1273
    %v1275 = vpack.c.bf16 %v1274, %v1274
    %v1276 = vld [vmem:[%s6] sm:$0xff]
    %v1277 = vld [vmem:[%s6 + $0x8] sm:$0xff]
    %v1278 = vld [vmem:[%s6 + $0x10] sm:$0xff]
    %v1279 = vld [vmem:[%s6 + $0x18] sm:$0xff]
    %v1280 = vld [vmem:[%s6 + $0x20] sm:$0xff]
    %v1281 = vld [vmem:[%s6 + $0x28] sm:$0xff]
    %v1282 = vld [vmem:[%s6 + $0x30] sm:$0xff]
    %v1283 = vld [vmem:[%s6 + $0x38] sm:$0xff]
    %v1284 = vld [vmem:[%s6 + $0x40] sm:$0xff]
    %v1285 = vld [vmem:[%s6 + $0x48] sm:$0xff]
    %v1286 = vld [vmem:[%s6 + $0x50] sm:$0xff]
    %v1287 = vld [vmem:[%s6 + $0x58] sm:$0xff]
    %v1288 = vld [vmem:[%s6 + $0x60] sm:$0xff]
    %v1289 = vld [vmem:[%s6 + $0x68] sm:$0xff]
    %v1290 = vld [vmem:[%s6 + $0x70] sm:$0xff]
    %v1291 = vld [vmem:[%s6 + $0x78] sm:$0xff]
    %v1292 = vld [vmem:[%s7] sm:$0xff]
    %v1294 = vlaneseq
    %v1295 = vshrl.u32 %v1294, 7
    %v1296 = vsub.s32 0, %v1295
    %v1297 = vrot.slane %v1292, %v1296
    %v1298 = vlaneseq
    %v1299 = vshrl.u32 %v1298, 7
    %v1300 = vsub.s32 1, %v1299
    %v1301 = vrot.slane %v1292, %v1300
    %v1302 = vlaneseq
    %v1303 = vshrl.u32 %v1302, 7
    %v1304 = vsub.s32 2, %v1303
    %v1305 = vrot.slane %v1292, %v1304
    %v1306 = vlaneseq
    %v1307 = vshrl.u32 %v1306, 7
    %v1308 = vsub.s32 3, %v1307
    %v1309 = vrot.slane %v1292, %v1308
    %v1310 = vlaneseq
    %v1311 = vshrl.u32 %v1310, 7
    %v1312 = vsub.s32 4, %v1311
    %v1313 = vrot.slane %v1292, %v1312
    %v1314 = vlaneseq
    %v1315 = vshrl.u32 %v1314, 7
    %v1316 = vsub.s32 5, %v1315
    %v1317 = vrot.slane %v1292, %v1316
    %v1318 = vlaneseq
    %v1319 = vshrl.u32 %v1318, 7
    %v1320 = vsub.s32 6, %v1319
    %v1321 = vrot.slane %v1292, %v1320
    %v1322 = vlaneseq
    %v1323 = vshrl.u32 %v1322, 7
    %v1324 = vsub.s32 7, %v1323
    %v1325 = vrot.slane %v1292, %v1324
    %v1350 = vunpack.c.l.b16 %v1276
    %v1351 = vunpack.c.h.b16 %v1276
    %v1352 = vunpack.c.l.b16 %v1277
    %v1353 = vunpack.c.h.b16 %v1277
    %v1354 = vunpack.c.l.b16 %v1278
    %v1355 = vunpack.c.h.b16 %v1278
    %v1356 = vunpack.c.l.b16 %v1279
    %v1357 = vunpack.c.h.b16 %v1279
    %v1358 = vunpack.c.l.b16 %v1280
    %v1359 = vunpack.c.h.b16 %v1280
    %v1360 = vunpack.c.l.b16 %v1281
    %v1361 = vunpack.c.h.b16 %v1281
    %v1362 = vunpack.c.l.b16 %v1282
    %v1363 = vunpack.c.h.b16 %v1282
    %v1364 = vunpack.c.l.b16 %v1283
    %v1365 = vunpack.c.h.b16 %v1283
    %v1366 = vunpack.c.l.b16 %v1284
    %v1367 = vunpack.c.h.b16 %v1284
    %v1368 = vunpack.c.l.b16 %v1285
    %v1369 = vunpack.c.h.b16 %v1285
    %v1370 = vunpack.c.l.b16 %v1286
    %v1371 = vunpack.c.h.b16 %v1286
    %v1372 = vunpack.c.l.b16 %v1287
    %v1373 = vunpack.c.h.b16 %v1287
    %v1374 = vunpack.c.l.b16 %v1288
    %v1375 = vunpack.c.h.b16 %v1288
    %v1376 = vunpack.c.l.b16 %v1289
    %v1377 = vunpack.c.h.b16 %v1289
    %v1378 = vunpack.c.l.b16 %v1290
    %v1379 = vunpack.c.h.b16 %v1290
    %v1380 = vunpack.c.l.b16 %v1291
    %v1381 = vunpack.c.h.b16 %v1291
    %v1382 = vpack.c.b16 %v1358, %v1350
    %v1383 = vpack.c.b16 %v1359, %v1351
    %v1384 = vpack.c.b16 %v1360, %v1352
    %v1385 = vpack.c.b16 %v1361, %v1353
    %v1386 = vpack.c.b16 %v1362, %v1354
    %v1387 = vpack.c.b16 %v1363, %v1355
    %v1388 = vpack.c.b16 %v1364, %v1356
    %v1389 = vpack.c.b16 %v1365, %v1357
    %v1390 = vpack.c.b16 %v1374, %v1366
    %v1391 = vpack.c.b16 %v1375, %v1367
    %v1392 = vpack.c.b16 %v1376, %v1368
    %v1393 = vpack.c.b16 %v1377, %v1369
    %v1394 = vpack.c.b16 %v1378, %v1370
    %v1395 = vpack.c.b16 %v1379, %v1371
    %v1396 = vpack.c.b16 %v1380, %v1372
    %v1397 = vpack.c.b16 %v1381, %v1373
    %v1415 = vsel %vm290, %v1275, 0
    %1417 = vmatprep.subr.bf16.mxu0 0
    %1418 = vmatpush1.bf16.msra.mxu0 0
    %1419 = vmatprep.subr.bf16.mxu0 0
    %1420 = vmatpush1.bf16.msra.mxu0 0
    %1421 = vmatprep.subr.bf16.mxu0 0
    %1422 = vmatpush1.bf16.msra.mxu0 0
    %1423 = vmatprep.subr.bf16.mxu0 0
    %1424 = vmatpush1.bf16.msra.mxu0 0
    %1425 = vmatprep.subr.bf16.mxu0 0
    %1426 = vmatpush1.bf16.msra.mxu0 0
    %1427 = vmatprep.subr.bf16.mxu0 0
    %1428 = vmatpush1.bf16.msra.mxu0 0
    %1429 = vmatprep.subr.bf16.mxu0 %v1391
    %1430 = vmatpush1.bf16.msra.mxu0 %v1390
    %1431 = vmatprep.subr.bf16.mxu0 %v1383
    %1432 = vmatpush1.bf16.msra.mxu0 %v1382
    %1433 = vmatprep.subr.bf16.mxu0 0
    %1434 = vmatpush2.bf16.msra.mxu0 0
    %1435 = vmatprep.subr.bf16.mxu0 0
    %1436 = vmatpush2.bf16.msra.mxu0 0
    %1437 = vmatprep.subr.bf16.mxu0 0
    %1438 = vmatpush2.bf16.msra.mxu0 0
    %1439 = vmatprep.subr.bf16.mxu0 0
    %1440 = vmatpush2.bf16.msra.mxu0 0
    %1441 = vmatprep.subr.bf16.mxu0 0
    %1442 = vmatpush2.bf16.msra.mxu0 0
    %1443 = vmatprep.subr.bf16.mxu0 0
    %1444 = vmatpush2.bf16.msra.mxu0 0
    %1445 = vmatprep.subr.bf16.mxu0 0
    %1446 = vmatpush2.bf16.msra.mxu0 0
    %1447 = vmatprep.subr.bf16.mxu0 0
    %1448 = vmatpush2.bf16.msra.mxu0 0
    %1449 = vmatprep.mubr.bf16.mxu0 0
    %1450 = vmatmul.mubr.bf16.gmra.mxu0 %v1415
    %v1451 = vpop.f32.mrf.mxu0
    %v1452 = vadd.f32 %v1297, %v1451
    %v1453 = vpop.f32.mrf.mxu0
    %v1454 = vadd.f32 %v1301, %v1453
    %v1455 = vpop.f32.mrf.mxu0
    %v1456 = vpop.f32.mrf.mxu0
    %1457 = vdwg.mxu0
    %1458 = vmatprep.subr.bf16.mxu0 0
    %1459 = vmatpush1.bf16.msra.mxu0 0
    %1460 = vmatprep.subr.bf16.mxu0 0
    %1461 = vmatpush1.bf16.msra.mxu0 0
    %1462 = vmatprep.subr.bf16.mxu0 0
    %1463 = vmatpush1.bf16.msra.mxu0 0
    %1464 = vmatprep.subr.bf16.mxu0 0
    %1465 = vmatpush1.bf16.msra.mxu0 0
    %1466 = vmatprep.subr.bf16.mxu0 0
    %1467 = vmatpush1.bf16.msra.mxu0 0
    %1468 = vmatprep.subr.bf16.mxu0 0
    %1469 = vmatpush1.bf16.msra.mxu0 0
    %1470 = vmatprep.subr.bf16.mxu0 %v1393
    %1471 = vmatpush1.bf16.msra.mxu0 %v1392
    %1472 = vmatprep.subr.bf16.mxu0 %v1385
    %1473 = vmatpush1.bf16.msra.mxu0 %v1384
    %1474 = vmatprep.subr.bf16.mxu0 0
    %1475 = vmatpush2.bf16.msra.mxu0 0
    %1476 = vmatprep.subr.bf16.mxu0 0
    %1477 = vmatpush2.bf16.msra.mxu0 0
    %1478 = vmatprep.subr.bf16.mxu0 0
    %1479 = vmatpush2.bf16.msra.mxu0 0
    %1480 = vmatprep.subr.bf16.mxu0 0
    %1481 = vmatpush2.bf16.msra.mxu0 0
    %1482 = vmatprep.subr.bf16.mxu0 0
    %1483 = vmatpush2.bf16.msra.mxu0 0
    %1484 = vmatprep.subr.bf16.mxu0 0
    %1485 = vmatpush2.bf16.msra.mxu0 0
    %1486 = vmatprep.subr.bf16.mxu0 0
    %1487 = vmatpush2.bf16.msra.mxu0 0
    %1488 = vmatprep.subr.bf16.mxu0 0
    %1489 = vmatpush2.bf16.msra.mxu0 0
    %1490 = vmatprep.mubr.bf16.mxu0 0
    %1491 = vmatmul.mubr.bf16.gmra.mxu0 %v1415
    %v1492 = vpop.f32.mrf.mxu0
    %v1493 = vadd.f32 %v1305, %v1492
    %v1494 = vpop.f32.mrf.mxu0
    %v1495 = vadd.f32 %v1309, %v1494
    %v1496 = vpop.f32.mrf.mxu0
    %v1497 = vpop.f32.mrf.mxu0
    %1498 = vdwg.mxu0
    %1499 = vmatprep.subr.bf16.mxu0 0
    %1500 = vmatpush1.bf16.msra.mxu0 0
    %1501 = vmatprep.subr.bf16.mxu0 0
    %1502 = vmatpush1.bf16.msra.mxu0 0
    %1503 = vmatprep.subr.bf16.mxu0 0
    %1504 = vmatpush1.bf16.msra.mxu0 0
    %1505 = vmatprep.subr.bf16.mxu0 0
    %1506 = vmatpush1.bf16.msra.mxu0 0
    %1507 = vmatprep.subr.bf16.mxu0 0
    %1508 = vmatpush1.bf16.msra.mxu0 0
    %1509 = vmatprep.subr.bf16.mxu0 0
    %1510 = vmatpush1.bf16.msra.mxu0 0
    %1511 = vmatprep.subr.bf16.mxu0 %v1395
    %1512 = vmatpush1.bf16.msra.mxu0 %v1394
    %1513 = vmatprep.subr.bf16.mxu0 %v1387
    %1514 = vmatpush1.bf16.msra.mxu0 %v1386
    %1515 = vmatprep.subr.bf16.mxu0 0
    %1516 = vmatpush2.bf16.msra.mxu0 0
    %1517 = vmatprep.subr.bf16.mxu0 0
    %1518 = vmatpush2.bf16.msra.mxu0 0
    %1519 = vmatprep.subr.bf16.mxu0 0
    %1520 = vmatpush2.bf16.msra.mxu0 0
    %1521 = vmatprep.subr.bf16.mxu0 0
    %1522 = vmatpush2.bf16.msra.mxu0 0
    %1523 = vmatprep.subr.bf16.mxu0 0
    %1524 = vmatpush2.bf16.msra.mxu0 0
    %1525 = vmatprep.subr.bf16.mxu0 0
    %1526 = vmatpush2.bf16.msra.mxu0 0
    %1527 = vmatprep.subr.bf16.mxu0 0
    %1528 = vmatpush2.bf16.msra.mxu0 0
    %1529 = vmatprep.subr.bf16.mxu0 0
    %1530 = vmatpush2.bf16.msra.mxu0 0
    %1531 = vmatprep.mubr.bf16.mxu0 0
    %1532 = vmatmul.mubr.bf16.gmra.mxu0 %v1415
    %v1533 = vpop.f32.mrf.mxu0
    %v1534 = vadd.f32 %v1313, %v1533
    %v1535 = vpop.f32.mrf.mxu0
    %v1536 = vadd.f32 %v1317, %v1535
    %v1537 = vpop.f32.mrf.mxu0
    %v1538 = vpop.f32.mrf.mxu0
    %1539 = vdwg.mxu0
    %1540 = vmatprep.subr.bf16.mxu0 0
    %1541 = vmatpush1.bf16.msra.mxu0 0
    %1542 = vmatprep.subr.bf16.mxu0 0
    %1543 = vmatpush1.bf16.msra.mxu0 0
    %1544 = vmatprep.subr.bf16.mxu0 0
    %1545 = vmatpush1.bf16.msra.mxu0 0
    %1546 = vmatprep.subr.bf16.mxu0 0
    %1547 = vmatpush1.bf16.msra.mxu0 0
    %1548 = vmatprep.subr.bf16.mxu0 0
    %1549 = vmatpush1.bf16.msra.mxu0 0
    %1550 = vmatprep.subr.bf16.mxu0 0
    %1551 = vmatpush1.bf16.msra.mxu0 0
    %1552 = vmatprep.subr.bf16.mxu0 %v1397
    %1553 = vmatpush1.bf16.msra.mxu0 %v1396
    %1554 = vmatprep.subr.bf16.mxu0 %v1389
    %1555 = vmatpush1.bf16.msra.mxu0 %v1388
    %1556 = vmatprep.subr.bf16.mxu0 0
    %1557 = vmatpush2.bf16.msra.mxu0 0
    %1558 = vmatprep.subr.bf16.mxu0 0
    %1559 = vmatpush2.bf16.msra.mxu0 0
    %1560 = vmatprep.subr.bf16.mxu0 0
    %1561 = vmatpush2.bf16.msra.mxu0 0
    %1562 = vmatprep.subr.bf16.mxu0 0
    %1563 = vmatpush2.bf16.msra.mxu0 0
    %1564 = vmatprep.subr.bf16.mxu0 0
    %1565 = vmatpush2.bf16.msra.mxu0 0
    %1566 = vmatprep.subr.bf16.mxu0 0
    %1567 = vmatpush2.bf16.msra.mxu0 0
    %1568 = vmatprep.subr.bf16.mxu0 0
    %1569 = vmatpush2.bf16.msra.mxu0 0
    %1570 = vmatprep.subr.bf16.mxu0 0
    %1571 = vmatpush2.bf16.msra.mxu0 0
    %1572 = vmatprep.mubr.bf16.mxu0 0
    %1573 = vmatmul.mubr.bf16.gmra.mxu0 %v1415
    %v1574 = vpop.f32.mrf.mxu0
    %v1575 = vadd.f32 %v1321, %v1574
    %v1576 = vpop.f32.mrf.mxu0
    %v1577 = vadd.f32 %v1325, %v1576
    %v1578 = vpop.f32.mrf.mxu0
    %v1579 = vpop.f32.mrf.mxu0
    %1580 = vdwg.mxu0
    %v1581 = vld [vmem:[%s2] sm:$0xff]
    %v1582 = vld [vmem:[%s2 + $0x8] sm:$0xff]
    %v1583 = vmul.f32 %v1581, %v1581
    %v1584 = vmul.f32 %v1582, %v1582
    %v1585 = vsub.f32 0.0, %v1583
    %v1586 = vsub.f32 0.0, %v1584
    %v1587 = vrcp.pop 8.283894e-21
    %v1588 = vmul.f32 %v1585, %v1587
    %v1589 = vmul.f32 %v1586, %v1587
    %v1590 = vmul.f32 %v1583, 6.594722e-30
    %v1591 = vmul.f32 %v1584, 6.594722e-30
    %v1592 = vmul.f32 %v1588, 1.442695
    %v1593 = vpow.pop %v1592
    %v1594 = vmul.f32 %v1589, 1.442695
    %v1595 = vpow.pop %v1594
    %v1596 = vmul.f32 %v1590, %v1593
    %v1597 = vmul.f32 %v1591, %v1595
    %v1598 = vxor.u32 %v1596, 2147483648
    %v1599 = vxor.u32 %v1597, 2147483648
    %v1600 = vmul.f32 %v1598, 1.442695
    %v1601 = vpow.pop %v1600
    %v1602 = vmul.f32 %v1599, 1.442695
    %v1603 = vpow.pop %v1602
    %v1604 = vadd.f32 %v1601, 1.0
    %v1605 = vadd.f32 %v1603, 1.0
    %v1606 = vrcp.pop %v1604
    %v1607 = vmul.f32 1.0, %v1606
    %v1608 = vrcp.pop %v1605
    %v1609 = vmul.f32 1.0, %v1608
    %v1618 = vcombine.low %v1452, %v1454
    %v1619 = vcombine.low %v1493, %v1495
    %v1621 = vunpack.c.l.s4 1983009808
    %v1622 = vunpack.c.0.s8 %v1621
    %v1623 = vlaneseq
    %v1624 = vshrl.u32 %v1623, 7
    %v1625 = vsub.s32 %v1622, %v1624
    %v1626 = vrot.slane %v1618, %v1625
    %v1628 = vunpack.c.l.s4 1983009808
    %v1629 = vunpack.c.0.s8 %v1628
    %v1630 = vlaneseq
    %v1631 = vshrl.u32 %v1630, 7
    %v1632 = vsub.s32 %v1629, %v1631
    %v1633 = vrot.slane %v1619, %v1632
    %v1634 = vcombine.low %v1626, %v1633
    %v1635 = vcombine.low %v1534, %v1536
    %v1636 = vcombine.low %v1575, %v1577
    %v1638 = vunpack.c.l.s4 1983009808
    %v1639 = vunpack.c.0.s8 %v1638
    %v1640 = vlaneseq
    %v1641 = vshrl.u32 %v1640, 7
    %v1642 = vsub.s32 %v1639, %v1641
    %v1643 = vrot.slane %v1635, %v1642
    %v1645 = vunpack.c.l.s4 1983009808
    %v1646 = vunpack.c.0.s8 %v1645
    %v1647 = vlaneseq
    %v1648 = vshrl.u32 %v1647, 7
    %v1649 = vsub.s32 %v1646, %v1648
    %v1650 = vrot.slane %v1636, %v1649
    %v1651 = vcombine.low %v1643, %v1650
    %v1654 = vadd.f32 %v1607, %v1634
    %v1655 = vadd.f32 %v1609, %v1651
    %v1656 = vrcp.pop %v365
    %v1657 = vmul.f32 %v1654, %v1656
    %v1658 = vrcp.pop %v366
    %v1659 = vmul.f32 %v1655, %v1658
    %v1660 = vmul.f32 %v1581, %v1657
    %v1661 = vmul.f32 %v1582, %v1659
    %1662 = vst [vmem:[%s9] sm:$0xff] %v1660
    %1663 = vst [vmem:[%s9 + $0x8] sm:$0xff] %v1661
    %v1665 = vrot.slane %v1654, 4
    %v1667 = vadd.f32 %v1654, %v1665
    %1668 = vst [vmem:[%s8] sm:$0xf] %v1667
    // Predicated region
    $region38: #{simple_boltzmann_v2.1} parent=1 // pred_check
      _
    $region39: #{simple_boltzmann_v2.1} parent=1 // pred_check_branch
      %1670 = sbr.rel (0) target = $region41
    $region40: #{simple_boltzmann_v2.1} parent=1 // pred_region
      _
    $region41: #{simple_boltzmann_v2.1} parent=1 // pred_fallthru
      _
    // Predicated region
    $region42: #{simple_boltzmann_v2.1} parent=1 // pred_check
      _
    $region43: #{simple_boltzmann_v2.1} parent=1 // pred_check_branch
      %1672 = sbr.rel (0) target = $region45
    $region44: #{simple_boltzmann_v2.1} parent=1 // pred_region
      _
    $region45: #{simple_boltzmann_v2.1} parent=1 // pred_fallthru
      _
    // Predicated region
    $region46: #{simple_boltzmann_v2.1} parent=1 // pred_check
      _
    $region47: #{simple_boltzmann_v2.1} parent=1 // pred_check_branch
      %1674 = sbr.rel (0) target = $region49
    $region48: #{simple_boltzmann_v2.1} parent=1 // pred_region
      _
    $region49: #{simple_boltzmann_v2.1} parent=1 // pred_fallthru
      _
    // Predicated region
    $region50: #{simple_boltzmann_v2.1} parent=1 // pred_check
      _
    $region51: #{simple_boltzmann_v2.1} parent=1 // pred_check_branch
      %1676 = sbr.rel (0) target = $region53
    $region52: #{simple_boltzmann_v2.1} parent=1 // pred_region
      _
    $region53: #{simple_boltzmann_v2.1} parent=1 // pred_fallthru
      _
    %1677 = vsyncpa [#allocation3], 1

</llo_original>
